<compile_context>
chip_gen: v5e
topology: v5e:2x2
jax: 0.10.0
libtpu: 0.0.40
codegen_flags: <defaults>
</compile_context>

<pallas_src>
import numpy as np
import jax
import jax.numpy as jnp
from jax.experimental import pallas as pl
from jax.experimental.pallas import tpu as pltpu


def _round_up(x, m):
    return ((x + m - 1) // m) * m


# ---------------------------------------------------------------------------
# Trace-time constants (numpy): periodic Hann window + fused windowed-DFT basis
# ---------------------------------------------------------------------------
def _window_np(fft_size, win_length):
    n = np.arange(win_length, dtype=np.float64)
    win = 0.5 * (1.0 - np.cos(2.0 * np.pi * n / win_length))  # torch.hann_window (periodic)
    full = np.zeros(fft_size, dtype=np.float64)
    lp = (fft_size - win_length) // 2                          # torch.stft centers short windows
    full[lp:lp + win_length] = win
    return full


def _fused_windowed_dft_np(fft_size, win_length, f_pad):
    """[win*cos | win*(-sin)] DFT basis, zero-padded along frequency -> (fft, 2*f_pad) f32.

    Columns [F, f_pad) and [f_pad + F, 2*f_pad) are exactly zero, so padded
    frequency bins give identical sqrt(1e-7) magnitudes for both signals and
    cancel in the L1 difference.
    """
    w = _window_np(fft_size, win_length)[:, None]
    F = fft_size // 2 + 1
    n = np.arange(fft_size, dtype=np.float64)[:, None]
    k = np.arange(F, dtype=np.float64)[None, :]
    ang = 2.0 * np.pi * n * k / fft_size
    wc = np.pad(w * np.cos(ang), ((0, 0), (0, f_pad - F)))
    ws = np.pad(w * (-np.sin(ang)), ((0, 0), (0, f_pad - F)))
    return np.concatenate([wc, ws], axis=1).astype(np.float32)


# ---------------------------------------------------------------------------
# Pallas wrapper
# ---------------------------------------------------------------------------
def stft_loss_pallas(y_r, y_g, fft_size=2048, hop_size=512, win_length=2048,
                     tm_max=512):
    """Equivalent of stft_loss(fft_size, hop_size, win_length, 'hann_window')(y_r, y_g).

    y_r, y_g: (B, 1, T) float32.  Returns the scalar L1 loss between magnitude STFTs.
    """
    assert fft_size % hop_size == 0, "in-kernel framing requires fft_size % hop_size == 0"
    assert hop_size % 8 == 0
    assert win_length <= fft_size
    assert tm_max % 8 == 0 and tm_max >= 8

    R = fft_size // hop_size                      # chunks per frame
    F = fft_size // 2 + 1
    F_pad = _round_up(F, 128)                     # lane-dense frequency axis

    y_r = jnp.squeeze(y_r, axis=1).astype(jnp.float32)   # (B, T)
    y_g = jnp.squeeze(y_g, axis=1).astype(jnp.float32)
    B, T = y_r.shape
    pad = int((fft_size - hop_size) / 2)
    y_r = jnp.pad(y_r, ((0, 0), (pad, pad)), mode="reflect")
    y_g = jnp.pad(y_g, ((0, 0), (pad, pad)), mode="reflect")
    T_pad = T + 2 * pad
    n_frames = 1 + (T_pad - fft_size) // hop_size
    assert n_frames >= 1

    # Frame tiling: tm frames per grid step, per batch.  Padded frames / chunks
    # are all-zero for both signals -> both magnitudes equal sqrt(1e-7) -> zero
    # L1 contribution, so only the normalization below needs the true counts.
    nf8 = _round_up(n_frames, 8)
    tm = min(tm_max, nf8)                         # multiple of 8 by construction
    assert tm % 8 == 0
    n_frames_pad = _round_up(nf8, tm)
    n_tiles = n_frames_pad // tm
    C_pad = _round_up(n_frames_pad + R - 1, 8)    # chunks kept per batch
    C_used = n_frames + R - 1                     # chunks backed by real signal

    def to_chunks(x):
        x = x[:, :C_used * hop_size].reshape(B, C_used, hop_size)
        return jnp.pad(x, ((0, 0), (0, C_pad - C_used), (0, 0)))

    chunks_r = to_chunks(y_r)                     # (B, C_pad, hop) f32
    chunks_g = to_chunks(y_g)
    # TODO(synk): the per-batch chunk array is VMEM-resident; for multi-minute
    # signals tile the chunk axis with a manual pl.ANY + make_async_copy pipeline.

    # Trace-time constant basis (no per-call EUP trig / HBM write).
    w_fused = jnp.asarray(
        _fused_windowed_dft_np(fft_size, win_length, F_pad)).astype(jnp.bfloat16)

    lane_aligned = (hop_size % 128 == 0)          # true for 2048/512 and the toy 512/128

    def kernel(cr_ref, cg_ref, w_ref, acc_ref):
        i = pl.program_id(1)
        base = pl.multiple_of(i * tm, 8)

        def frame_parts(ch_ref):
            # Part r holds chunk[base + j + r] in row j; frame j = concat_r part_r[j].
            return [ch_ref[pl.ds(base + r, tm), :] for r in range(R)]

        pr = frame_parts(cr_ref)
        pg = frame_parts(cg_ref)

        if lane_aligned:
            # Single stacked matmul: the fused basis streams through the MXU once
            # per grid step for BOTH signals.
            lhs = jnp.concatenate(
                [jnp.concatenate(pr, axis=1), jnp.concatenate(pg, axis=1)],
                axis=0).astype(jnp.bfloat16)                      # (2*tm, fft)
            spec = jnp.dot(lhs, w_ref[...],
                           preferred_element_type=jnp.float32)    # (2*tm, 2*F_pad)
        else:
            # hop not a multiple of 128: avoid unaligned lane concatenation by
            # accumulating R sub-matmuls against disjoint row blocks of the basis
            # (still one pass over the weights per grid step).
            spec = None
            for r in range(R):
                lhs_r = jnp.concatenate([pr[r], pg[r]], axis=0).astype(jnp.bfloat16)
                term = jnp.dot(lhs_r, w_ref[r * hop_size:(r + 1) * hop_size, :],
                               preferred_element_type=jnp.float32)
                spec = term if spec is None else spec + term

        rr, ri = spec[:tm, :F_pad], spec[:tm, F_pad:]
        gr, gi = spec[tm:, :F_pad], spec[tm:, F_pad:]
        mag_r = jnp.sqrt(jnp.maximum(rr * rr + ri * ri, 1e-7))
        mag_g = jnp.sqrt(jnp.maximum(gr * gr + gi * gi, 1e-7))
        diff = jnp.abs(mag_r - mag_g)                             # (tm, F_pad) f32

        # Fold tm rows into 8 sublanes with pure VPU adds (no cross-lane reduce
        # on the hot path); the final scalar reduce happens in JAX.
        partial = jnp.sum(diff.reshape(-1, 8, F_pad), axis=0)     # (8, F_pad)

        @pl.when(i == 0)
        def _():
            acc_ref[...] = jnp.zeros_like(acc_ref)

        acc_ref[...] = acc_ref[...] + partial

    # VMEM budget: double-buffered resident inputs + in-kernel temporaries.
    basis_bytes = fft_size * 2 * F_pad * 2
    chunk_bytes = C_pad * hop_size * 4
    acc_bytes = 8 * F_pad * 4
    temp_bytes = (2 * tm * fft_size * 6 + 2 * tm * 2 * F_pad * 4 + 3 * tm * F_pad * 4)
    vmem_est = 2 * basis_bytes + 4 * chunk_bytes + 2 * acc_bytes + temp_bytes
    vmem_limit = int(min(64 * 1024 * 1024, max(32 * 1024 * 1024, 2 * vmem_est)))
    # TODO(synk): on v7x (64 MiB VMEM) single-buffer the constant basis
    # (pipeline_mode=pl.Buffered(1)) and cap tm_max at 256-512; on v5e/v6e
    # (128 MiB VMEM) tm_max can be raised to 512-1024.

    m_total = B * n_frames_pad
    cost = pl.CostEstimate(
        flops=2 * (2 * m_total) * fft_size * (2 * F_pad),
        transcendentals=2 * m_total * F_pad,
        bytes_accessed=2 * B * chunk_bytes + basis_bytes + B * acc_bytes,
    )

    acc = pl.pallas_call(
        kernel,
        out_shape=jax.ShapeDtypeStruct((B, 8, F_pad), jnp.float32),
        grid_spec=pltpu.PrefetchScalarGridSpec(
            num_scalar_prefetch=0,
            grid=(B, n_tiles),
            in_specs=[
                # Per-batch chunked signals: DMA'd once per batch, resident across
                # the frame-tile axis.
                pl.BlockSpec((None, C_pad, hop_size), lambda b, i: (b, 0, 0)),
                pl.BlockSpec((None, C_pad, hop_size), lambda b, i: (b, 0, 0)),
                # Fused windowed-DFT basis, resident across the whole grid.
                pl.BlockSpec((fft_size, 2 * F_pad), lambda b, i: (0, 0)),
            ],
            # Per-batch lane-dense accumulator slab (private per "parallel" step).
            out_specs=pl.BlockSpec((None, 8, F_pad), lambda b, i: (b, 0, 0)),
        ),
        compiler_params=pltpu.CompilerParams(
            dimension_semantics=("parallel", "arbitrary"),
            vmem_limit_bytes=vmem_limit),
        cost_estimate=cost,
    )(chunks_r, chunks_g, w_fused)

    # Mean over the TRUE element count (B * n_frames * F, not the padded one).
    return jnp.sum(acc) / jnp.float32(B * n_frames * F)


# ---------------------------------------------------------------------------
# Pure-JAX f32 reference (sanity check)
# ---------------------------------------------------------------------------
def _frame_signal(x, fft_size, hop_size):
    B, T = x.shape
    n_frames = 1 + (T - fft_size) // hop_size
    idx = jnp.arange(n_frames)[:, None] * hop_size + jnp.arange(fft_size)[None, :]
    return x[:, idx]                              # (B, n_frames, fft)


def stft_loss_ref(y_r, y_g, fft_size=2048, hop_size=512, win_length=2048):
    win = jnp.asarray(_window_np(fft_size, win_length), dtype=jnp.float32)

    def mag(x):
        x = jnp.squeeze(x, axis=1).astype(jnp.float32)
        pad = int((fft_size - hop_size) / 2)
        x = jnp.pad(x, ((0, 0), (pad, pad)), mode="reflect")
        frames = _frame_signal(x, fft_size, hop_size) * win[None, None, :]
        spec = jnp.fft.rfft(frames, n=fft_size, axis=-1)
        return jnp.sqrt(jnp.maximum(jnp.real(spec) ** 2 + jnp.imag(spec) ** 2, 1e-7))

    return jnp.mean(jnp.abs(mag(y_r) - mag(y_g)))


if __name__ == "__main__":
    key = jax.random.PRNGKey(0)
    k1, k2 = jax.random.split(key)
    B, T = 2, 2048
    # Small analogue of the module default 2048/512/2048: same fft/hop ratio
    # (R = 4) and hop a multiple of 128, so the lane-aligned single-matmul path
    # (the one the production config uses) is exercised.
    fft_size, hop_size, win_length = 512, 128, 512

    y_r = jax.random.normal(k1, (B, 1, T), dtype=jnp.float32)
    y_g = jax.random.normal(k2, (B, 1, T), dtype=jnp.float32)

    loss = jax.block_until_ready(
        stft_loss_pallas(y_r, y_g, fft_size, hop_size, win_length))
    ref = jax.block_until_ready(
        stft_loss_ref(y_r, y_g, fft_size, hop_size, win_length))

    np.testing.assert_allclose(np.asarray(loss), np.asarray(ref),
                               rtol=5e-2, atol=1e-2)
    print("KERNEL_OK")
</pallas_src>

<mosaic_0001>
module attributes {stable_mosaic.version = 11 : i64} {
  func.func @kernel(%arg0: i32, %arg1: i32, %arg2: memref<1x24x128xf32, #tpu.memory_space<vmem>>, %arg3: memref<1x24x128xf32, #tpu.memory_space<vmem>>, %arg4: memref<512x768xbf16, #tpu.memory_space<vmem>>, %arg5: memref<1x8x384xf32, #tpu.memory_space<vmem>>) attributes {dimension_semantics = [#tpu.dimension_semantics<parallel>, #tpu.dimension_semantics<arbitrary>], iteration_bounds = array<i64: 2, 1>, scalar_prefetch = 0 : i64, scratch_operands = 0 : i64, tpu.core_type = #tpu.core_type<tc>, window_params = [{transform_indices = @transform_0, window_bounds = array<i64: 1, 24, 128>}, {transform_indices = @transform_1, window_bounds = array<i64: 1, 24, 128>}, {pipeline_mode = #tpu.pipeline_mode<synchronous>, transform_indices = @transform_2, window_bounds = array<i64: 512, 768>}, {transform_indices = @transform_3, window_bounds = array<i64: 1, 8, 384>}]} {
    %c16_i32 = arith.constant 16 : i32
    %0 = arith.muli %arg1, %c16_i32 : i32
    %1 = tpu.assume_multiple %0, 8 : i32
    %c0_i32 = arith.constant 0 : i32
    %2 = arith.addi %1, %c0_i32 : i32
    %c0 = arith.constant 0 : index
    %3 = arith.index_cast %2 : i32 to index
    %c0_0 = arith.constant 0 : index
    %4 = vector.load %arg2[%c0, %3, %c0_0] : memref<1x24x128xf32, #tpu.memory_space<vmem>>, vector<1x16x128xf32>
    %5 = vector.shape_cast %4 : vector<1x16x128xf32> to vector<16x128xf32>
    %c1_i32 = arith.constant 1 : i32
    %6 = arith.addi %1, %c1_i32 : i32
    %c0_1 = arith.constant 0 : index
    %7 = arith.index_cast %6 : i32 to index
    %c0_2 = arith.constant 0 : index
    %8 = vector.load %arg2[%c0_1, %7, %c0_2] : memref<1x24x128xf32, #tpu.memory_space<vmem>>, vector<1x16x128xf32>
    %9 = vector.shape_cast %8 : vector<1x16x128xf32> to vector<16x128xf32>
    %c2_i32 = arith.constant 2 : i32
    %10 = arith.addi %1, %c2_i32 : i32
    %c0_3 = arith.constant 0 : index
    %11 = arith.index_cast %10 : i32 to index
    %c0_4 = arith.constant 0 : index
    %12 = vector.load %arg2[%c0_3, %11, %c0_4] : memref<1x24x128xf32, #tpu.memory_space<vmem>>, vector<1x16x128xf32>
    %13 = vector.shape_cast %12 : vector<1x16x128xf32> to vector<16x128xf32>
    %c3_i32 = arith.constant 3 : i32
    %14 = arith.addi %1, %c3_i32 : i32
    %c0_5 = arith.constant 0 : index
    %15 = arith.index_cast %14 : i32 to index
    %c0_6 = arith.constant 0 : index
    %16 = vector.load %arg2[%c0_5, %15, %c0_6] : memref<1x24x128xf32, #tpu.memory_space<vmem>>, vector<1x16x128xf32>
    %17 = vector.shape_cast %16 : vector<1x16x128xf32> to vector<16x128xf32>
    %c0_i32_7 = arith.constant 0 : i32
    %18 = arith.addi %1, %c0_i32_7 : i32
    %c0_8 = arith.constant 0 : index
    %19 = arith.index_cast %18 : i32 to index
    %c0_9 = arith.constant 0 : index
    %20 = vector.load %arg3[%c0_8, %19, %c0_9] : memref<1x24x128xf32, #tpu.memory_space<vmem>>, vector<1x16x128xf32>
    %21 = vector.shape_cast %20 : vector<1x16x128xf32> to vector<16x128xf32>
    %c1_i32_10 = arith.constant 1 : i32
    %22 = arith.addi %1, %c1_i32_10 : i32
    %c0_11 = arith.constant 0 : index
    %23 = arith.index_cast %22 : i32 to index
    %c0_12 = arith.constant 0 : index
    %24 = vector.load %arg3[%c0_11, %23, %c0_12] : memref<1x24x128xf32, #tpu.memory_space<vmem>>, vector<1x16x128xf32>
    %25 = vector.shape_cast %24 : vector<1x16x128xf32> to vector<16x128xf32>
    %c2_i32_13 = arith.constant 2 : i32
    %26 = arith.addi %1, %c2_i32_13 : i32
    %c0_14 = arith.constant 0 : index
    %27 = arith.index_cast %26 : i32 to index
    %c0_15 = arith.constant 0 : index
    %28 = vector.load %arg3[%c0_14, %27, %c0_15] : memref<1x24x128xf32, #tpu.memory_space<vmem>>, vector<1x16x128xf32>
    %29 = vector.shape_cast %28 : vector<1x16x128xf32> to vector<16x128xf32>
    %c3_i32_16 = arith.constant 3 : i32
    %30 = arith.addi %1, %c3_i32_16 : i32
    %c0_17 = arith.constant 0 : index
    %31 = arith.index_cast %30 : i32 to index
    %c0_18 = arith.constant 0 : index
    %32 = vector.load %arg3[%c0_17, %31, %c0_18] : memref<1x24x128xf32, #tpu.memory_space<vmem>>, vector<1x16x128xf32>
    %33 = vector.shape_cast %32 : vector<1x16x128xf32> to vector<16x128xf32>
    %34 = tpu.concatenate %5, %9, %13, %17 in 1 : vector<16x128xf32>, vector<16x128xf32>, vector<16x128xf32>, vector<16x128xf32> -> vector<16x512xf32>
    %35 = tpu.concatenate %21, %25, %29, %33 in 1 : vector<16x128xf32>, vector<16x128xf32>, vector<16x128xf32>, vector<16x128xf32> -> vector<16x512xf32>
    %36 = tpu.concatenate %34, %35 in 0 : vector<16x512xf32>, vector<16x512xf32> -> vector<32x512xf32>
    %37 = arith.truncf %36 : vector<32x512xf32> to vector<32x512xbf16>
    %c0_19 = arith.constant 0 : index
    %c0_20 = arith.constant 0 : index
    %38 = vector.load %arg4[%c0_19, %c0_20] : memref<512x768xbf16, #tpu.memory_space<vmem>>, vector<512x768xbf16>
    %cst = arith.constant dense<0.000000e+00> : vector<32x768xf32>
    %39 = tpu.matmul %37, %38, %cst {dimension_numbers = #tpu.dot_dimension_numbers<[1], [0], [0], [1], [0, 0, 1, 1], [], []>} : vector<32x512xbf16>, vector<512x768xbf16>, vector<32x768xf32> -> vector<32x768xf32>
    %40 = vector.extract_strided_slice %39 {offsets = [0, 0], sizes = [16, 384], strides = [1, 1]} : vector<32x768xf32> to vector<16x384xf32>
    %41 = vector.extract_strided_slice %39 {offsets = [0, 384], sizes = [16, 384], strides = [1, 1]} : vector<32x768xf32> to vector<16x384xf32>
    %42 = vector.extract_strided_slice %39 {offsets = [16, 0], sizes = [16, 384], strides = [1, 1]} : vector<32x768xf32> to vector<16x384xf32>
    %43 = vector.extract_strided_slice %39 {offsets = [16, 384], sizes = [16, 384], strides = [1, 1]} : vector<32x768xf32> to vector<16x384xf32>
    %44 = arith.mulf %40, %40 : vector<16x384xf32>
    %45 = arith.mulf %41, %41 : vector<16x384xf32>
    %46 = arith.addf %44, %45 : vector<16x384xf32>
    %cst_21 = arith.constant 1.000000e-07 : f32
    %47 = vector.broadcast %cst_21 : f32 to vector<16x384xf32>
    %48 = arith.maximumf %46, %47 : vector<16x384xf32>
    %49 = math.sqrt %48 : vector<16x384xf32>
    %50 = arith.mulf %42, %42 : vector<16x384xf32>
    %51 = arith.mulf %43, %43 : vector<16x384xf32>
    %52 = arith.addf %50, %51 : vector<16x384xf32>
    %cst_22 = arith.constant 1.000000e-07 : f32
    %53 = vector.broadcast %cst_22 : f32 to vector<16x384xf32>
    %54 = arith.maximumf %52, %53 : vector<16x384xf32>
    %55 = math.sqrt %54 : vector<16x384xf32>
    %56 = arith.subf %49, %55 : vector<16x384xf32>
    %57 = math.absf %56 : vector<16x384xf32>
    %58 = vector.shape_cast %57 : vector<16x384xf32> to vector<2x8x384xf32>
    %cst_23 = arith.constant dense<0.000000e+00> : vector<8x384xf32>
    %59 = vector.multi_reduction <add>, %58, %cst_23 [0] : vector<2x8x384xf32> to vector<8x384xf32>
    %c0_i32_24 = arith.constant 0 : i32
    %60 = arith.cmpi eq, %arg1, %c0_i32_24 : i32
    %61 = arith.extui %60 : i1 to i32
    %c0_i32_25 = arith.constant 0 : i32
    %62 = arith.cmpi ne, %61, %c0_i32_25 : i32
    scf.if %62 {
      %cst_32 = arith.constant 0.000000e+00 : f32
      %69 = vector.broadcast %cst_32 : f32 to vector<8x384xf32>
      %c0_33 = arith.constant 0 : index
      %c0_34 = arith.constant 0 : index
      %c0_35 = arith.constant 0 : index
      %70 = vector.load %arg5[%c0_33, %c0_34, %c0_35] : memref<1x8x384xf32, #tpu.memory_space<vmem>>, vector<1x8x384xf32>
      %71 = vector.shape_cast %70 : vector<1x8x384xf32> to vector<8x384xf32>
      %72 = vector.shape_cast %69 : vector<8x384xf32> to vector<1x8x384xf32>
      tpu.vector_store %arg5[%c0_33, %c0_34, %c0_35], %72 {strides = array<i32>} : memref<1x8x384xf32, #tpu.memory_space<vmem>>, vector<1x8x384xf32>,
    } else {
    }
    %c0_26 = arith.constant 0 : index
    %c0_27 = arith.constant 0 : index
    %c0_28 = arith.constant 0 : index
    %63 = vector.load %arg5[%c0_26, %c0_27, %c0_28] : memref<1x8x384xf32, #tpu.memory_space<vmem>>, vector<1x8x384xf32>
    %64 = vector.shape_cast %63 : vector<1x8x384xf32> to vector<8x384xf32>
    %65 = arith.addf %64, %59 : vector<8x384xf32>
    %c0_29 = arith.constant 0 : index
    %c0_30 = arith.constant 0 : index
    %c0_31 = arith.constant 0 : index
    %66 = vector.load %arg5[%c0_29, %c0_30, %c0_31] : memref<1x8x384xf32, #tpu.memory_space<vmem>>, vector<1x8x384xf32>
    %67 = vector.shape_cast %66 : vector<1x8x384xf32> to vector<8x384xf32>
    %68 = vector.shape_cast %65 : vector<8x384xf32> to vector<1x8x384xf32>
    tpu.vector_store %arg5[%c0_29, %c0_30, %c0_31], %68 {strides = array<i32>} : memref<1x8x384xf32, #tpu.memory_space<vmem>>, vector<1x8x384xf32>,
    return
  }
  func.func @transform_0(%arg0: i32, %arg1: i32) -> (i32, i32, i32) {
    %c0_i32 = arith.constant 0 : i32
    %c0_i32_0 = arith.constant 0 : i32
    %c0_i32_1 = arith.constant 0 : i32
    return %arg0, %c0_i32, %c0_i32_0 : i32, i32, i32
  }
  func.func @transform_1(%arg0: i32, %arg1: i32) -> (i32, i32, i32) {
    %c0_i32 = arith.constant 0 : i32
    %c0_i32_0 = arith.constant 0 : i32
    %c0_i32_1 = arith.constant 0 : i32
    return %arg0, %c0_i32, %c0_i32_0 : i32, i32, i32
  }
  func.func @transform_2(%arg0: i32, %arg1: i32) -> (i32, i32) {
    %c0_i32 = arith.constant 0 : i32
    %c0_i32_0 = arith.constant 0 : i32
    %c0_i32_1 = arith.constant 0 : i32
    return %c0_i32, %c0_i32_0 : i32, i32
  }
  func.func @transform_3(%arg0: i32, %arg1: i32) -> (i32, i32, i32) {
    %c0_i32 = arith.constant 0 : i32
    %c0_i32_0 = arith.constant 0 : i32
    %c0_i32_1 = arith.constant 0 : i32
    return %arg0, %c0_i32, %c0_i32_0 : i32, i32, i32
  }
}

</mosaic_0001>

<llo_original>
// kernel: tpu_custom_call.1
$region0: #{tpu_custom_call.1}
  #allocation0 [shape = 'u32[]', space=smem, size = 0x4, offset = 0x4, fixed_abs, tag = 'smem constant byte address 0x4 - core index']
  #allocation1 [shape = 'u32[72,128]{1,0:T(1,128)}', space=vmem, size = 0x9000, scoped, tag = 'internal scratch']
  %s0 = inlined_call_operand.hbm [shape: f32[2,24,128], index: 0, kind: input, shape index: {}]
  %s1 = inlined_call_operand.hbm [shape: f32[2,24,128], index: 1, kind: input, shape index: {}]
  %s2 = inlined_call_operand.hbm [shape: bf16[512,768], index: 2, kind: input, shape index: {}]
  %s3 = inlined_call_operand.hbm [shape: f32[2,8,384], index: 3, kind: output, shape index: {}]
  %s4 = sld [smem:[#allocation0]]
  $region61: #{tpu_custom_call.1} parent=0
    _
  %s6 = ssub.s32 1, %s4
  %s7 = scalar_select 0, %s6, %s4
  $region1: #{tpu_custom_call.1} parent=0
    #allocation2 [shape = 'u8[24576]{0}', space=vmem, size = 0x6000, scoped, tag = 'input window, operand 0']
    #allocation3 [shape = 's32[2]{0}', space=sflag, size = 0x8, scoped, tag = 'scoped memory for tpu_custom_call.1']
    #allocation4 [shape = 's32[2]{0}', space=sflag, size = 0x8, scoped, tag = 'scoped memory for tpu_custom_call.1']
    #allocation5 [shape = 'u8[24576]{0}', space=vmem, size = 0x6000, scoped, tag = 'input window, operand 1']
    #allocation6 [shape = 's32[2]{0}', space=sflag, size = 0x8, scoped, tag = 'scoped memory for tpu_custom_call.1']
    #allocation7 [shape = 'u8[786432]{0}', space=vmem, size = 0xc0000, scoped, tag = 'input window, operand 2, single buffered']
    #allocation8 [shape = 'u8[24576]{0}', space=vmem, size = 0x6000, scoped, tag = 'output window, operand 0']
    %8 = vsyncpa [#allocation3], 0
    %s9 = scalar_lea.sflag [#allocation3], 1
    %10 = vsyncpa %s9, 0
    %11 = vsyncpa [#allocation6], 0
    %s12 = scalar_lea.sflag [#allocation6], 1
    %13 = vsyncpa %s12, 0
    %14 = vsyncpa [#allocation4], 0
    %s15 = scalar_lea.sflag [#allocation4], 1
    %16 = vsyncpa %s15, 0
    loop: start=0, step=1, limit=4
    $region2: #{tpu_custom_call.1} parent=1 // loop_pre_header
      _
    $region3: #{tpu_custom_call.1} parent=1 // loop_header
      %s18 = sphi 0, %s22
      %p19 = scmp.ge.s32.totalorder %s18, 4
      %s25 = sphi 0, %s37
      %s26 = sphi 0, %s33
      %s27 = sphi 0, %s25
      %s28 = sphi 0, %s26
      %s29 = sphi 0, %s27
      %s30 = sphi 0, %s28
      %s40 = sphi 0, %s42
      %s43 = sphi 0, %s40
      %s44 = sphi 0, %s43
      %s60 = sphi 0, %s44
      %s66 = sphi 0, %s68
      %s69 = sphi 0, %s66
      %s70 = sphi 0, %s69
      %s86 = sphi 0, %s70
      %s90 = sphi 0, %s90
      %s92 = sphi 0, %s90
      %s93 = sphi 0, %s92
      %s107 = sphi 0, %s93
      %s113 = sphi 0, %s115
      %s116 = sphi 0, %s113
      %s117 = sphi 0, %s116
      %s133 = sphi 0, %s117
    $region4: #{tpu_custom_call.1} parent=1 // loop_header_branch
      %21 = sbr.rel (%p19) target = $region8
    $region5: #{tpu_custom_call.1} parent=1 // loop_body
      %s23 = ssub.s32 %s18, 1
      %s24 = ssub.s32 %s18, 2
      %s31 = sadd.s32 1, %s26
      %p32 = scmp.ge.s32.totalorder %s31, 1
      %s33 = scalar_select %p32, 0, %s31
      %s34 = sadd.s32 1, %s25
      %s35 = scalar_select %p32, %s34, %s25
      %p36 = scmp.ge.s32.totalorder %s35, 2
      %s37 = scalar_select %p36, 0, %s35
      %s38 = ssub.s32 %s25, %s37
      %p39 = scmp.eq.s32.totalorder %s38, 0
      %s41 = sadd.s32 %s40, 1
      %s42 = scalar_select %p39, %s40, %s41
      %p45 = pneg %p39
      %p46 = scmp.eq.s32.totalorder %s18, 1
      %p47 = por %p45, %p46
      %p48 = scmp.ne.s32.totalorder %s40, %s43
      %p49 = scmp.eq.s32.totalorder %s18, 0
      %p50 = por %p48, %p49
      %p51 = scmp.ne.s32.totalorder %s40, %s43
      %p52 = scmp.eq.s32.totalorder %s23, 1
      %p53 = por %p51, %p52
      %p54 = scmp.ne.s32.totalorder %s43, %s44
      %p55 = scmp.eq.s32.totalorder %s23, 0
      %p56 = por %p54, %p55
      %p57 = scmp.ne.s32.totalorder %s43, %s44
      %p58 = scmp.eq.s32.totalorder %s24, 1
      %p59 = por %p57, %p58
      %p61 = scmp.ne.s32.totalorder %s44, %s60
      %p62 = scmp.eq.s32.totalorder %s24, 0
      %p63 = por %p61, %p62
      %s64 = ssub.s32 %s25, %s37
      %p65 = scmp.eq.s32.totalorder %s64, 0
      %s67 = sadd.s32 %s66, 1
      %s68 = scalar_select %p65, %s66, %s67
      %p71 = pneg %p65
      %p72 = scmp.eq.s32.totalorder %s18, 1
      %p73 = por %p71, %p72
      %p74 = scmp.ne.s32.totalorder %s66, %s69
      %p75 = scmp.eq.s32.totalorder %s18, 0
      %p76 = por %p74, %p75
      %p77 = scmp.ne.s32.totalorder %s66, %s69
      %p78 = scmp.eq.s32.totalorder %s23, 1
      %p79 = por %p77, %p78
      %p80 = scmp.ne.s32.totalorder %s69, %s70
      %p81 = scmp.eq.s32.totalorder %s23, 0
      %p82 = por %p80, %p81
      %p83 = scmp.ne.s32.totalorder %s69, %s70
      %p84 = scmp.eq.s32.totalorder %s24, 1
      %p85 = por %p83, %p84
      %p87 = scmp.ne.s32.totalorder %s70, %s86
      %p88 = scmp.eq.s32.totalorder %s24, 0
      %p89 = por %p87, %p88
      %s91 = sadd.s32 %s90, 1
      %p94 = scmp.eq.s32.totalorder %s18, 1
      %p95 = scmp.ne.s32.totalorder %s90, %s92
      %p96 = scmp.eq.s32.totalorder %s18, 0
      %p97 = por %p95, %p96
      %p98 = scmp.ne.s32.totalorder %s90, %s92
      %p99 = scmp.eq.s32.totalorder %s23, 1
      %p100 = por %p98, %p99
      %p101 = scmp.ne.s32.totalorder %s92, %s93
      %p102 = scmp.eq.s32.totalorder %s23, 0
      %p103 = por %p101, %p102
      %p104 = scmp.ne.s32.totalorder %s92, %s93
      %p105 = scmp.eq.s32.totalorder %s24, 1
      %p106 = por %p104, %p105
      %p108 = scmp.ne.s32.totalorder %s93, %s107
      %p109 = scmp.eq.s32.totalorder %s24, 0
      %p110 = por %p108, %p109
      %s111 = ssub.s32 %s25, %s37
      %p112 = scmp.eq.s32.totalorder %s111, 0
      %s114 = sadd.s32 %s113, 1
      %s115 = scalar_select %p112, %s113, %s114
      %p118 = pneg %p112
      %p119 = scmp.eq.s32.totalorder %s18, 1
      %p120 = por %p118, %p119
      %p121 = scmp.ne.s32.totalorder %s113, %s116
      %p122 = scmp.eq.s32.totalorder %s18, 0
      %p123 = por %p121, %p122
      %p124 = scmp.ne.s32.totalorder %s113, %s116
      %p125 = scmp.eq.s32.totalorder %s23, 1
      %p126 = por %p124, %p125
      %p127 = scmp.ne.s32.totalorder %s116, %s117
      %p128 = scmp.eq.s32.totalorder %s23, 0
      %p129 = por %p127, %p128
      %p130 = scmp.ne.s32.totalorder %s116, %s117
      %p131 = scmp.eq.s32.totalorder %s24, 1
      %p132 = por %p130, %p131
      %p134 = scmp.ne.s32.totalorder %s117, %s133
      %p135 = scmp.eq.s32.totalorder %s24, 0
      %p136 = por %p134, %p135
      %p137 = scmp.le.s32.totalorder 1, %s18
      %p138 = scmp.lt.s32.totalorder %s18, 3
      %p139 = pnand %p137, %p138
      %p140 = pneg %p139
      // Predicated region
      $region9: #{tpu_custom_call.1} parent=5 // pred_check
        _
      $region10: #{tpu_custom_call.1} parent=5 // pred_check_branch
        %142 = sbr.rel (%p139) target = $region12
      $region11: #{tpu_custom_call.1} parent=5 // pred_region
        %s143 = ssub.s32 %s18, 1
        // Predicated region
        $region13: #{tpu_custom_call.1} parent=11 // pred_check
          %p144 = pneg %p103
        $region14: #{tpu_custom_call.1} parent=11 // pred_check_branch
          %146 = sbr.rel (%p144) target = $region16
        $region15: #{tpu_custom_call.1} parent=11 // pred_region
          %148 = vsyncadd [#allocation6], 0
          %s149 = sshll.u32 %s2, 4
          %s150 = int_to_ptr.hbm [resolvable:$true] %s149
          %s151 = sshll.u32 [#allocation7], 4
          %s152 = int_to_ptr.vmem [resolvable:$true] %s151
          %157 = dma.hbm_to_vmem [thread:$0]  %s150, 24576, %s152, [#allocation6], 384, 384, 24
        $region16: #{tpu_custom_call.1} parent=11 // pred_fallthru
          _
      $region12: #{tpu_custom_call.1} parent=5 // pred_fallthru
        _
      %p158 = scmp.lt.s32.totalorder %s18, 2
      // Predicated region
      $region17: #{tpu_custom_call.1} parent=5 // pred_check
        %p159 = pneg %p158
      $region18: #{tpu_custom_call.1} parent=5 // pred_check_branch
        %161 = sbr.rel (%p159) target = $region20
      $region19: #{tpu_custom_call.1} parent=5 // pred_region
        // Predicated region
        $region21: #{tpu_custom_call.1} parent=19 // pred_check
          %p162 = pneg %p50
        $region22: #{tpu_custom_call.1} parent=19 // pred_check_branch
          %164 = sbr.rel (%p162) target = $region24
        $region23: #{tpu_custom_call.1} parent=19 // pred_region
          %s165 = sand.u32 %s40, 1
          %s166 = scalar_lea.sflag [#allocation3], %s165
          %s167 = sand.u32 %s40, 1
          %s168 = smul.addr %s167, 24
          %s169 = scalar_lea.vmem [#allocation2], %s168
          %171 = vsyncadd %s166, 0
          %s172 = smul.addr %s25, 3
          %s173 = smul.addr %s172, 8
          %s174 = scalar_lea.hbm %s0, %s173
          %s175 = sshll.u32 %s174, 4
          %s176 = int_to_ptr.hbm [resolvable:$true] %s175
          %s177 = sshll.u32 %s169, 4
          %s178 = int_to_ptr.vmem [resolvable:$true] %s177
          %183 = dma.hbm_to_vmem [thread:$0]  %s176, 384, %s178, %s166, 128, 128, 8
        $region24: #{tpu_custom_call.1} parent=19 // pred_fallthru
          _
        // Predicated region
        $region25: #{tpu_custom_call.1} parent=19 // pred_check
          %p184 = pneg %p76
        $region26: #{tpu_custom_call.1} parent=19 // pred_check_branch
          %186 = sbr.rel (%p184) target = $region28
        $region27: #{tpu_custom_call.1} parent=19 // pred_region
          %s187 = sand.u32 %s18, 1
          %s188 = scalar_lea.sflag [#allocation6], %s187
          %s189 = sand.u32 %s66, 1
          %s190 = smul.addr %s189, 24
          %s191 = scalar_lea.vmem [#allocation5], %s190
          %193 = vsyncadd %s188, 0
          %s194 = smul.addr %s25, 3
          %s195 = smul.addr %s194, 8
          %s196 = scalar_lea.hbm %s1, %s195
          %s197 = sshll.u32 %s196, 4
          %s198 = int_to_ptr.hbm [resolvable:$true] %s197
          %s199 = sshll.u32 %s191, 4
          %s200 = int_to_ptr.vmem [resolvable:$true] %s199
          %205 = dma.hbm_to_vmem [thread:$0]  %s198, 384, %s200, %s188, 128, 128, 8
        $region28: #{tpu_custom_call.1} parent=19 // pred_fallthru
          _
      $region20: #{tpu_custom_call.1} parent=5 // pred_fallthru
        _
      %p206 = scmp.le.s32.totalorder 1, %s18
      %p207 = scmp.lt.s32.totalorder %s18, 3
      %p208 = pnand %p206, %p207
      %p209 = pneg %p208
      // Predicated region
      $region29: #{tpu_custom_call.1} parent=5 // pred_check
        _
      $region30: #{tpu_custom_call.1} parent=5 // pred_check_branch
        %211 = sbr.rel (%p208) target = $region32
      $region31: #{tpu_custom_call.1} parent=5 // pred_region
        %s212 = ssub.s32 %s18, 1
        %s213 = sand.u32 %s43, 1
        %s214 = scalar_lea.sflag [#allocation3], %s213
        %s215 = sand.u32 %s43, 1
        %s216 = smul.addr %s215, 24
        %s217 = scalar_lea.vmem [#allocation2], %s216
        // Predicated region
        $region33: #{tpu_custom_call.1} parent=31 // pred_check
          %p218 = pneg %p56
        $region34: #{tpu_custom_call.1} parent=31 // pred_check_branch
          %220 = sbr.rel (%p218) target = $region36
        $region35: #{tpu_custom_call.1} parent=31 // pred_region
          %222 = dma.done %s214, 384
        $region36: #{tpu_custom_call.1} parent=31 // pred_fallthru
          _
        %s223 = sand.u32 %s23, 1
        %s224 = scalar_lea.sflag [#allocation6], %s223
        %s225 = sand.u32 %s69, 1
        %s226 = smul.addr %s225, 24
        %s227 = scalar_lea.vmem [#allocation5], %s226
        // Predicated region
        $region37: #{tpu_custom_call.1} parent=31 // pred_check
          %p228 = pneg %p82
        $region38: #{tpu_custom_call.1} parent=31 // pred_check_branch
          %230 = sbr.rel (%p228) target = $region40
        $region39: #{tpu_custom_call.1} parent=31 // pred_region
          %232 = dma.done %s224, 384
        $region40: #{tpu_custom_call.1} parent=31 // pred_fallthru
          _
        // Predicated region
        $region41: #{tpu_custom_call.1} parent=31 // pred_check
          %p233 = pneg %p103
        $region42: #{tpu_custom_call.1} parent=31 // pred_check_branch
          %235 = sbr.rel (%p233) target = $region44
        $region43: #{tpu_custom_call.1} parent=31 // pred_region
          %237 = dma.done [#allocation6], 24576
        $region44: #{tpu_custom_call.1} parent=31 // pred_fallthru
          _
        %s238 = sand.u32 %s43, 1
        %s239 = scalar_lea.sflag [#allocation3], %s238
        %s240 = sand.u32 %s43, 1
        %s241 = smul.addr %s240, 24
        %s242 = scalar_lea.vmem [#allocation2], %s241
        %p243 = pneg %p56
        %p244 = pneg %p53
        %s245 = sand.u32 %s23, 1
        %s246 = scalar_lea.sflag [#allocation6], %s245
        %s247 = sand.u32 %s69, 1
        %s248 = smul.addr %s247, 24
        %s249 = scalar_lea.vmem [#allocation5], %s248
        %p250 = pneg %p82
        %p251 = pneg %p79
        %p252 = pneg %p103
        %p253 = pneg %p100
        %p254 = pneg %p129
        %p255 = pneg %p126
        %s256 = sand.u32 %s116, 1
        %s257 = scalar_lea.sflag [#allocation4], %s256
        %s258 = sand.u32 %s116, 1
        %s259 = smul.addr %s258, 24
        %s260 = scalar_lea.vmem [#allocation8], %s259
        %s261 = smul.u32 %s28, 16
        %s262 = scalar_lea.vmem %s217, %s261 [#allocation2]
        %v263 = vld [vmem:[%s262] sm:$0xff]
        %v264 = vld [vmem:[%s262 + $0x8] sm:$0xff]
        %s265 = sadd.s32 %s261, 1
        %s266 = scalar_lea.vmem %s217, %s265 [#allocation2]
        %v267 = vld [vmem:[%s266] sm:$0xff]
        %v268 = vld [vmem:[%s266 + $0x8] sm:$0xff]
        %s269 = sadd.s32 %s261, 2
        %s270 = scalar_lea.vmem %s217, %s269 [#allocation2]
        %v271 = vld [vmem:[%s270] sm:$0xff]
        %v272 = vld [vmem:[%s270 + $0x8] sm:$0xff]
        %s273 = sadd.s32 %s261, 3
        %s274 = scalar_lea.vmem %s217, %s273 [#allocation2]
        %v275 = vld [vmem:[%s274] sm:$0xff]
        %v276 = vld [vmem:[%s274 + $0x8] sm:$0xff]
        %s277 = scalar_lea.vmem %s227, %s261 [#allocation5]
        %v278 = vld [vmem:[%s277] sm:$0xff]
        %v279 = vld [vmem:[%s277 + $0x8] sm:$0xff]
        %s280 = scalar_lea.vmem %s227, %s265 [#allocation5]
        %v281 = vld [vmem:[%s280] sm:$0xff]
        %v282 = vld [vmem:[%s280 + $0x8] sm:$0xff]
        %s283 = scalar_lea.vmem %s227, %s269 [#allocation5]
        %v284 = vld [vmem:[%s283] sm:$0xff]
        %v285 = vld [vmem:[%s283 + $0x8] sm:$0xff]
        %s286 = scalar_lea.vmem %s227, %s273 [#allocation5]
        %v287 = vld [vmem:[%s286] sm:$0xff]
        %v288 = vld [vmem:[%s286 + $0x8] sm:$0xff]
        %v289 = vpack.c.bf16 %v264, %v263
        %v290 = vpack.c.bf16 %v268, %v267
        %v291 = vpack.c.bf16 %v272, %v271
        %v292 = vpack.c.bf16 %v276, %v275
        %v293 = vpack.c.bf16 %v279, %v278
        %v294 = vpack.c.bf16 %v282, %v281
        %v295 = vpack.c.bf16 %v285, %v284
        %v296 = vpack.c.bf16 %v288, %v287
        %v297 = vld [vmem:[#allocation7] sm:$0xff]
        %v298 = vld [vmem:[#allocation7 + $0x8] sm:$0xff]
        %v299 = vld [vmem:[#allocation7 + $0x10] sm:$0xff]
        %v300 = vld [vmem:[#allocation7 + $0x18] sm:$0xff]
        %v301 = vld [vmem:[#allocation7 + $0x20] sm:$0xff]
        %v302 = vld [vmem:[#allocation7 + $0x28] sm:$0xff]
        %v303 = vld [vmem:[#allocation7 + $0x30] sm:$0xff]
        %v304 = vld [vmem:[#allocation7 + $0x38] sm:$0xff]
        %v305 = vld [vmem:[#allocation7 + $0x40] sm:$0xff]
        %v306 = vld [vmem:[#allocation7 + $0x48] sm:$0xff]
        %v307 = vld [vmem:[#allocation7 + $0x50] sm:$0xff]
        %v308 = vld [vmem:[#allocation7 + $0x58] sm:$0xff]
        %v309 = vld [vmem:[#allocation7 + $0x60] sm:$0xff]
        %v310 = vld [vmem:[#allocation7 + $0x68] sm:$0xff]
        %v311 = vld [vmem:[#allocation7 + $0x70] sm:$0xff]
        %v312 = vld [vmem:[#allocation7 + $0x78] sm:$0xff]
        %v313 = vld [vmem:[#allocation7 + $0x80] sm:$0xff]
        %v314 = vld [vmem:[#allocation7 + $0x88] sm:$0xff]
        %v315 = vld [vmem:[#allocation7 + $0x90] sm:$0xff]
        %v316 = vld [vmem:[#allocation7 + $0x98] sm:$0xff]
        %v317 = vld [vmem:[#allocation7 + $0xa0] sm:$0xff]
        %v318 = vld [vmem:[#allocation7 + $0xa8] sm:$0xff]
        %v319 = vld [vmem:[#allocation7 + $0xb0] sm:$0xff]
        %v320 = vld [vmem:[#allocation7 + $0xb8] sm:$0xff]
        %v321 = vld [vmem:[#allocation7 + $0xc0] sm:$0xff]
        %v322 = vld [vmem:[#allocation7 + $0xc8] sm:$0xff]
        %v323 = vld [vmem:[#allocation7 + $0xd0] sm:$0xff]
        %v324 = vld [vmem:[#allocation7 + $0xd8] sm:$0xff]
        %v325 = vld [vmem:[#allocation7 + $0xe0] sm:$0xff]
        %v326 = vld [vmem:[#allocation7 + $0xe8] sm:$0xff]
        %v327 = vld [vmem:[#allocation7 + $0xf0] sm:$0xff]
        %v328 = vld [vmem:[#allocation7 + $0xf8] sm:$0xff]
        %v329 = vld [vmem:[#allocation7 + $0x100] sm:$0xff]
        %v330 = vld [vmem:[#allocation7 + $0x108] sm:$0xff]
        %v331 = vld [vmem:[#allocation7 + $0x110] sm:$0xff]
        %v332 = vld [vmem:[#allocation7 + $0x118] sm:$0xff]
        %v333 = vld [vmem:[#allocation7 + $0x120] sm:$0xff]
        %v334 = vld [vmem:[#allocation7 + $0x128] sm:$0xff]
        %v335 = vld [vmem:[#allocation7 + $0x130] sm:$0xff]
        %v336 = vld [vmem:[#allocation7 + $0x138] sm:$0xff]
        %v337 = vld [vmem:[#allocation7 + $0x140] sm:$0xff]
        %v338 = vld [vmem:[#allocation7 + $0x148] sm:$0xff]
        %v339 = vld [vmem:[#allocation7 + $0x150] sm:$0xff]
        %v340 = vld [vmem:[#allocation7 + $0x158] sm:$0xff]
        %v341 = vld [vmem:[#allocation7 + $0x160] sm:$0xff]
        %v342 = vld [vmem:[#allocation7 + $0x168] sm:$0xff]
        %v343 = vld [vmem:[#allocation7 + $0x170] sm:$0xff]
        %v344 = vld [vmem:[#allocation7 + $0x178] sm:$0xff]
        %v345 = vld [vmem:[#allocation7 + $0x180] sm:$0xff]
        %v346 = vld [vmem:[#allocation7 + $0x188] sm:$0xff]
        %v347 = vld [vmem:[#allocation7 + $0x190] sm:$0xff]
        %v348 = vld [vmem:[#allocation7 + $0x198] sm:$0xff]
        %v349 = vld [vmem:[#allocation7 + $0x1a0] sm:$0xff]
        %v350 = vld [vmem:[#allocation7 + $0x1a8] sm:$0xff]
        %v351 = vld [vmem:[#allocation7 + $0x1b0] sm:$0xff]
        %v352 = vld [vmem:[#allocation7 + $0x1b8] sm:$0xff]
        %v353 = vld [vmem:[#allocation7 + $0x1c0] sm:$0xff]
        %v354 = vld [vmem:[#allocation7 + $0x1c8] sm:$0xff]
        %v355 = vld [vmem:[#allocation7 + $0x1d0] sm:$0xff]
        %v356 = vld [vmem:[#allocation7 + $0x1d8] sm:$0xff]
        %v357 = vld [vmem:[#allocation7 + $0x1e0] sm:$0xff]
        %v358 = vld [vmem:[#allocation7 + $0x1e8] sm:$0xff]
        %v359 = vld [vmem:[#allocation7 + $0x1f0] sm:$0xff]
        %v360 = vld [vmem:[#allocation7 + $0x1f8] sm:$0xff]
        %v361 = vld [vmem:[#allocation7 + $0x200] sm:$0xff]
        %v362 = vld [vmem:[#allocation7 + $0x208] sm:$0xff]
        %v363 = vld [vmem:[#allocation7 + $0x210] sm:$0xff]
        %v364 = vld [vmem:[#allocation7 + $0x218] sm:$0xff]
        %v365 = vld [vmem:[#allocation7 + $0x220] sm:$0xff]
        %v366 = vld [vmem:[#allocation7 + $0x228] sm:$0xff]
        %v367 = vld [vmem:[#allocation7 + $0x230] sm:$0xff]
        %v368 = vld [vmem:[#allocation7 + $0x238] sm:$0xff]
        %v369 = vld [vmem:[#allocation7 + $0x240] sm:$0xff]
        %v370 = vld [vmem:[#allocation7 + $0x248] sm:$0xff]
        %v371 = vld [vmem:[#allocation7 + $0x250] sm:$0xff]
        %v372 = vld [vmem:[#allocation7 + $0x258] sm:$0xff]
        %v373 = vld [vmem:[#allocation7 + $0x260] sm:$0xff]
        %v374 = vld [vmem:[#allocation7 + $0x268] sm:$0xff]
        %v375 = vld [vmem:[#allocation7 + $0x270] sm:$0xff]
        %v376 = vld [vmem:[#allocation7 + $0x278] sm:$0xff]
        %v377 = vld [vmem:[#allocation7 + $0x280] sm:$0xff]
        %v378 = vld [vmem:[#allocation7 + $0x288] sm:$0xff]
        %v379 = vld [vmem:[#allocation7 + $0x290] sm:$0xff]
        %v380 = vld [vmem:[#allocation7 + $0x298] sm:$0xff]
        %v381 = vld [vmem:[#allocation7 + $0x2a0] sm:$0xff]
        %v382 = vld [vmem:[#allocation7 + $0x2a8] sm:$0xff]
        %v383 = vld [vmem:[#allocation7 + $0x2b0] sm:$0xff]
        %v384 = vld [vmem:[#allocation7 + $0x2b8] sm:$0xff]
        %v385 = vld [vmem:[#allocation7 + $0x2c0] sm:$0xff]
        %v386 = vld [vmem:[#allocation7 + $0x2c8] sm:$0xff]
        %v387 = vld [vmem:[#allocation7 + $0x2d0] sm:$0xff]
        %v388 = vld [vmem:[#allocation7 + $0x2d8] sm:$0xff]
        %v389 = vld [vmem:[#allocation7 + $0x2e0] sm:$0xff]
        %v390 = vld [vmem:[#allocation7 + $0x2e8] sm:$0xff]
        %v391 = vld [vmem:[#allocation7 + $0x2f0] sm:$0xff]
        %v392 = vld [vmem:[#allocation7 + $0x2f8] sm:$0xff]
        %v393 = vld [vmem:[#allocation7 + $0x300] sm:$0xff]
        %v394 = vld [vmem:[#allocation7 + $0x308] sm:$0xff]
        %v395 = vld [vmem:[#allocation7 + $0x310] sm:$0xff]
        %v396 = vld [vmem:[#allocation7 + $0x318] sm:$0xff]
        %v397 = vld [vmem:[#allocation7 + $0x320] sm:$0xff]
        %v398 = vld [vmem:[#allocation7 + $0x328] sm:$0xff]
        %v399 = vld [vmem:[#allocation7 + $0x330] sm:$0xff]
        %v400 = vld [vmem:[#allocation7 + $0x338] sm:$0xff]
        %v401 = vld [vmem:[#allocation7 + $0x340] sm:$0xff]
        %v402 = vld [vmem:[#allocation7 + $0x348] sm:$0xff]
        %v403 = vld [vmem:[#allocation7 + $0x350] sm:$0xff]
        %v404 = vld [vmem:[#allocation7 + $0x358] sm:$0xff]
        %v405 = vld [vmem:[#allocation7 + $0x360] sm:$0xff]
        %v406 = vld [vmem:[#allocation7 + $0x368] sm:$0xff]
        %v407 = vld [vmem:[#allocation7 + $0x370] sm:$0xff]
        %v408 = vld [vmem:[#allocation7 + $0x378] sm:$0xff]
        %v409 = vld [vmem:[#allocation7 + $0x380] sm:$0xff]
        %v410 = vld [vmem:[#allocation7 + $0x388] sm:$0xff]
        %v411 = vld [vmem:[#allocation7 + $0x390] sm:$0xff]
        %v412 = vld [vmem:[#allocation7 + $0x398] sm:$0xff]
        %v413 = vld [vmem:[#allocation7 + $0x3a0] sm:$0xff]
        %v414 = vld [vmem:[#allocation7 + $0x3a8] sm:$0xff]
        %v415 = vld [vmem:[#allocation7 + $0x3b0] sm:$0xff]
        %v416 = vld [vmem:[#allocation7 + $0x3b8] sm:$0xff]
        %v417 = vld [vmem:[#allocation7 + $0x3c0] sm:$0xff]
        %v418 = vld [vmem:[#allocation7 + $0x3c8] sm:$0xff]
        %v419 = vld [vmem:[#allocation7 + $0x3d0] sm:$0xff]
        %v420 = vld [vmem:[#allocation7 + $0x3d8] sm:$0xff]
        %v421 = vld [vmem:[#allocation7 + $0x3e0] sm:$0xff]
        %v422 = vld [vmem:[#allocation7 + $0x3e8] sm:$0xff]
        %v423 = vld [vmem:[#allocation7 + $0x3f0] sm:$0xff]
        %v424 = vld [vmem:[#allocation7 + $0x3f8] sm:$0xff]
        %v425 = vld [vmem:[#allocation7 + $0x400] sm:$0xff]
        %v426 = vld [vmem:[#allocation7 + $0x408] sm:$0xff]
        %v427 = vld [vmem:[#allocation7 + $0x410] sm:$0xff]
        %v428 = vld [vmem:[#allocation7 + $0x418] sm:$0xff]
        %v429 = vld [vmem:[#allocation7 + $0x420] sm:$0xff]
        %v430 = vld [vmem:[#allocation7 + $0x428] sm:$0xff]
        %v431 = vld [vmem:[#allocation7 + $0x430] sm:$0xff]
        %v432 = vld [vmem:[#allocation7 + $0x438] sm:$0xff]
        %v433 = vld [vmem:[#allocation7 + $0x440] sm:$0xff]
        %v434 = vld [vmem:[#allocation7 + $0x448] sm:$0xff]
        %v435 = vld [vmem:[#allocation7 + $0x450] sm:$0xff]
        %v436 = vld [vmem:[#allocation7 + $0x458] sm:$0xff]
        %v437 = vld [vmem:[#allocation7 + $0x460] sm:$0xff]
        %v438 = vld [vmem:[#allocation7 + $0x468] sm:$0xff]
        %v439 = vld [vmem:[#allocation7 + $0x470] sm:$0xff]
        %v440 = vld [vmem:[#allocation7 + $0x478] sm:$0xff]
        %v441 = vld [vmem:[#allocation7 + $0x480] sm:$0xff]
        %v442 = vld [vmem:[#allocation7 + $0x488] sm:$0xff]
        %v443 = vld [vmem:[#allocation7 + $0x490] sm:$0xff]
        %v444 = vld [vmem:[#allocation7 + $0x498] sm:$0xff]
        %v445 = vld [vmem:[#allocation7 + $0x4a0] sm:$0xff]
        %v446 = vld [vmem:[#allocation7 + $0x4a8] sm:$0xff]
        %v447 = vld [vmem:[#allocation7 + $0x4b0] sm:$0xff]
        %v448 = vld [vmem:[#allocation7 + $0x4b8] sm:$0xff]
        %v449 = vld [vmem:[#allocation7 + $0x4c0] sm:$0xff]
        %v450 = vld [vmem:[#allocation7 + $0x4c8] sm:$0xff]
        %v451 = vld [vmem:[#allocation7 + $0x4d0] sm:$0xff]
        %v452 = vld [vmem:[#allocation7 + $0x4d8] sm:$0xff]
        %v453 = vld [vmem:[#allocation7 + $0x4e0] sm:$0xff]
        %v454 = vld [vmem:[#allocation7 + $0x4e8] sm:$0xff]
        %v455 = vld [vmem:[#allocation7 + $0x4f0] sm:$0xff]
        %v456 = vld [vmem:[#allocation7 + $0x4f8] sm:$0xff]
        %v457 = vld [vmem:[#allocation7 + $0x500] sm:$0xff]
        %v458 = vld [vmem:[#allocation7 + $0x508] sm:$0xff]
        %v459 = vld [vmem:[#allocation7 + $0x510] sm:$0xff]
        %v460 = vld [vmem:[#allocation7 + $0x518] sm:$0xff]
        %v461 = vld [vmem:[#allocation7 + $0x520] sm:$0xff]
        %v462 = vld [vmem:[#allocation7 + $0x528] sm:$0xff]
        %v463 = vld [vmem:[#allocation7 + $0x530] sm:$0xff]
        %v464 = vld [vmem:[#allocation7 + $0x538] sm:$0xff]
        %v465 = vld [vmem:[#allocation7 + $0x540] sm:$0xff]
        %v466 = vld [vmem:[#allocation7 + $0x548] sm:$0xff]
        %v467 = vld [vmem:[#allocation7 + $0x550] sm:$0xff]
        %v468 = vld [vmem:[#allocation7 + $0x558] sm:$0xff]
        %v469 = vld [vmem:[#allocation7 + $0x560] sm:$0xff]
        %v470 = vld [vmem:[#allocation7 + $0x568] sm:$0xff]
        %v471 = vld [vmem:[#allocation7 + $0x570] sm:$0xff]
        %v472 = vld [vmem:[#allocation7 + $0x578] sm:$0xff]
        %v473 = vld [vmem:[#allocation7 + $0x580] sm:$0xff]
        %v474 = vld [vmem:[#allocation7 + $0x588] sm:$0xff]
        %v475 = vld [vmem:[#allocation7 + $0x590] sm:$0xff]
        %v476 = vld [vmem:[#allocation7 + $0x598] sm:$0xff]
        %v477 = vld [vmem:[#allocation7 + $0x5a0] sm:$0xff]
        %v478 = vld [vmem:[#allocation7 + $0x5a8] sm:$0xff]
        %v479 = vld [vmem:[#allocation7 + $0x5b0] sm:$0xff]
        %v480 = vld [vmem:[#allocation7 + $0x5b8] sm:$0xff]
        %v481 = vld [vmem:[#allocation7 + $0x5c0] sm:$0xff]
        %v482 = vld [vmem:[#allocation7 + $0x5c8] sm:$0xff]
        %v483 = vld [vmem:[#allocation7 + $0x5d0] sm:$0xff]
        %v484 = vld [vmem:[#allocation7 + $0x5d8] sm:$0xff]
        %v485 = vld [vmem:[#allocation7 + $0x5e0] sm:$0xff]
        %v486 = vld [vmem:[#allocation7 + $0x5e8] sm:$0xff]
        %v487 = vld [vmem:[#allocation7 + $0x5f0] sm:$0xff]
        %v488 = vld [vmem:[#allocation7 + $0x5f8] sm:$0xff]
        %v681 = vunpack.c.l.b16 %v297
        %v682 = vunpack.c.h.b16 %v297
        %v683 = vunpack.c.l.b16 %v298
        %v684 = vunpack.c.h.b16 %v298
        %v685 = vunpack.c.l.b16 %v299
        %v686 = vunpack.c.h.b16 %v299
        %v687 = vunpack.c.l.b16 %v300
        %v688 = vunpack.c.h.b16 %v300
        %v689 = vunpack.c.l.b16 %v301
        %v690 = vunpack.c.h.b16 %v301
        %v691 = vunpack.c.l.b16 %v302
        %v692 = vunpack.c.h.b16 %v302
        %v693 = vunpack.c.l.b16 %v303
        %v694 = vunpack.c.h.b16 %v303
        %v695 = vunpack.c.l.b16 %v304
        %v696 = vunpack.c.h.b16 %v304
        %v697 = vunpack.c.l.b16 %v305
        %v698 = vunpack.c.h.b16 %v305
        %v699 = vunpack.c.l.b16 %v306
        %v700 = vunpack.c.h.b16 %v306
        %v701 = vunpack.c.l.b16 %v307
        %v702 = vunpack.c.h.b16 %v307
        %v703 = vunpack.c.l.b16 %v308
        %v704 = vunpack.c.h.b16 %v308
        %v705 = vunpack.c.l.b16 %v309
        %v706 = vunpack.c.h.b16 %v309
        %v707 = vunpack.c.l.b16 %v310
        %v708 = vunpack.c.h.b16 %v310
        %v709 = vunpack.c.l.b16 %v311
        %v710 = vunpack.c.h.b16 %v311
        %v711 = vunpack.c.l.b16 %v312
        %v712 = vunpack.c.h.b16 %v312
        %v713 = vunpack.c.l.b16 %v313
        %v714 = vunpack.c.h.b16 %v313
        %v715 = vunpack.c.l.b16 %v314
        %v716 = vunpack.c.h.b16 %v314
        %v717 = vunpack.c.l.b16 %v315
        %v718 = vunpack.c.h.b16 %v315
        %v719 = vunpack.c.l.b16 %v316
        %v720 = vunpack.c.h.b16 %v316
        %v721 = vunpack.c.l.b16 %v317
        %v722 = vunpack.c.h.b16 %v317
        %v723 = vunpack.c.l.b16 %v318
        %v724 = vunpack.c.h.b16 %v318
        %v725 = vunpack.c.l.b16 %v319
        %v726 = vunpack.c.h.b16 %v319
        %v727 = vunpack.c.l.b16 %v320
        %v728 = vunpack.c.h.b16 %v320
        %v729 = vunpack.c.l.b16 %v321
        %v730 = vunpack.c.h.b16 %v321
        %v731 = vunpack.c.l.b16 %v322
        %v732 = vunpack.c.h.b16 %v322
        %v733 = vunpack.c.l.b16 %v323
        %v734 = vunpack.c.h.b16 %v323
        %v735 = vunpack.c.l.b16 %v324
        %v736 = vunpack.c.h.b16 %v324
        %v737 = vunpack.c.l.b16 %v325
        %v738 = vunpack.c.h.b16 %v325
        %v739 = vunpack.c.l.b16 %v326
        %v740 = vunpack.c.h.b16 %v326
        %v741 = vunpack.c.l.b16 %v327
        %v742 = vunpack.c.h.b16 %v327
        %v743 = vunpack.c.l.b16 %v328
        %v744 = vunpack.c.h.b16 %v328
        %v745 = vunpack.c.l.b16 %v329
        %v746 = vunpack.c.h.b16 %v329
        %v747 = vunpack.c.l.b16 %v330
        %v748 = vunpack.c.h.b16 %v330
        %v749 = vunpack.c.l.b16 %v331
        %v750 = vunpack.c.h.b16 %v331
        %v751 = vunpack.c.l.b16 %v332
        %v752 = vunpack.c.h.b16 %v332
        %v753 = vunpack.c.l.b16 %v333
        %v754 = vunpack.c.h.b16 %v333
        %v755 = vunpack.c.l.b16 %v334
        %v756 = vunpack.c.h.b16 %v334
        %v757 = vunpack.c.l.b16 %v335
        %v758 = vunpack.c.h.b16 %v335
        %v759 = vunpack.c.l.b16 %v336
        %v760 = vunpack.c.h.b16 %v336
        %v761 = vunpack.c.l.b16 %v337
        %v762 = vunpack.c.h.b16 %v337
        %v763 = vunpack.c.l.b16 %v338
        %v764 = vunpack.c.h.b16 %v338
        %v765 = vunpack.c.l.b16 %v339
        %v766 = vunpack.c.h.b16 %v339
        %v767 = vunpack.c.l.b16 %v340
        %v768 = vunpack.c.h.b16 %v340
        %v769 = vunpack.c.l.b16 %v341
        %v770 = vunpack.c.h.b16 %v341
        %v771 = vunpack.c.l.b16 %v342
        %v772 = vunpack.c.h.b16 %v342
        %v773 = vunpack.c.l.b16 %v343
        %v774 = vunpack.c.h.b16 %v343
        %v775 = vunpack.c.l.b16 %v344
        %v776 = vunpack.c.h.b16 %v344
        %v777 = vunpack.c.l.b16 %v345
        %v778 = vunpack.c.h.b16 %v345
        %v779 = vunpack.c.l.b16 %v346
        %v780 = vunpack.c.h.b16 %v346
        %v781 = vunpack.c.l.b16 %v347
        %v782 = vunpack.c.h.b16 %v347
        %v783 = vunpack.c.l.b16 %v348
        %v784 = vunpack.c.h.b16 %v348
        %v785 = vunpack.c.l.b16 %v349
        %v786 = vunpack.c.h.b16 %v349
        %v787 = vunpack.c.l.b16 %v350
        %v788 = vunpack.c.h.b16 %v350
        %v789 = vunpack.c.l.b16 %v351
        %v790 = vunpack.c.h.b16 %v351
        %v791 = vunpack.c.l.b16 %v352
        %v792 = vunpack.c.h.b16 %v352
        %v793 = vunpack.c.l.b16 %v353
        %v794 = vunpack.c.h.b16 %v353
        %v795 = vunpack.c.l.b16 %v354
        %v796 = vunpack.c.h.b16 %v354
        %v797 = vunpack.c.l.b16 %v355
        %v798 = vunpack.c.h.b16 %v355
        %v799 = vunpack.c.l.b16 %v356
        %v800 = vunpack.c.h.b16 %v356
        %v801 = vunpack.c.l.b16 %v357
        %v802 = vunpack.c.h.b16 %v357
        %v803 = vunpack.c.l.b16 %v358
        %v804 = vunpack.c.h.b16 %v358
        %v805 = vunpack.c.l.b16 %v359
        %v806 = vunpack.c.h.b16 %v359
        %v807 = vunpack.c.l.b16 %v360
        %v808 = vunpack.c.h.b16 %v360
        %v809 = vunpack.c.l.b16 %v361
        %v810 = vunpack.c.h.b16 %v361
        %v811 = vunpack.c.l.b16 %v362
        %v812 = vunpack.c.h.b16 %v362
        %v813 = vunpack.c.l.b16 %v363
        %v814 = vunpack.c.h.b16 %v363
        %v815 = vunpack.c.l.b16 %v364
        %v816 = vunpack.c.h.b16 %v364
        %v817 = vunpack.c.l.b16 %v365
        %v818 = vunpack.c.h.b16 %v365
        %v819 = vunpack.c.l.b16 %v366
        %v820 = vunpack.c.h.b16 %v366
        %v821 = vunpack.c.l.b16 %v367
        %v822 = vunpack.c.h.b16 %v367
        %v823 = vunpack.c.l.b16 %v368
        %v824 = vunpack.c.h.b16 %v368
        %v825 = vunpack.c.l.b16 %v369
        %v826 = vunpack.c.h.b16 %v369
        %v827 = vunpack.c.l.b16 %v370
        %v828 = vunpack.c.h.b16 %v370
        %v829 = vunpack.c.l.b16 %v371
        %v830 = vunpack.c.h.b16 %v371
        %v831 = vunpack.c.l.b16 %v372
        %v832 = vunpack.c.h.b16 %v372
        %v833 = vunpack.c.l.b16 %v373
        %v834 = vunpack.c.h.b16 %v373
        %v835 = vunpack.c.l.b16 %v374
        %v836 = vunpack.c.h.b16 %v374
        %v837 = vunpack.c.l.b16 %v375
        %v838 = vunpack.c.h.b16 %v375
        %v839 = vunpack.c.l.b16 %v376
        %v840 = vunpack.c.h.b16 %v376
        %v841 = vunpack.c.l.b16 %v377
        %v842 = vunpack.c.h.b16 %v377
        %v843 = vunpack.c.l.b16 %v378
        %v844 = vunpack.c.h.b16 %v378
        %v845 = vunpack.c.l.b16 %v379
        %v846 = vunpack.c.h.b16 %v379
        %v847 = vunpack.c.l.b16 %v380
        %v848 = vunpack.c.h.b16 %v380
        %v849 = vunpack.c.l.b16 %v381
        %v850 = vunpack.c.h.b16 %v381
        %v851 = vunpack.c.l.b16 %v382
        %v852 = vunpack.c.h.b16 %v382
        %v853 = vunpack.c.l.b16 %v383
        %v854 = vunpack.c.h.b16 %v383
        %v855 = vunpack.c.l.b16 %v384
        %v856 = vunpack.c.h.b16 %v384
        %v857 = vunpack.c.l.b16 %v385
        %v858 = vunpack.c.h.b16 %v385
        %v859 = vunpack.c.l.b16 %v386
        %v860 = vunpack.c.h.b16 %v386
        %v861 = vunpack.c.l.b16 %v387
        %v862 = vunpack.c.h.b16 %v387
        %v863 = vunpack.c.l.b16 %v388
        %v864 = vunpack.c.h.b16 %v388
        %v865 = vunpack.c.l.b16 %v389
        %v866 = vunpack.c.h.b16 %v389
        %v867 = vunpack.c.l.b16 %v390
        %v868 = vunpack.c.h.b16 %v390
        %v869 = vunpack.c.l.b16 %v391
        %v870 = vunpack.c.h.b16 %v391
        %v871 = vunpack.c.l.b16 %v392
        %v872 = vunpack.c.h.b16 %v392
        %v873 = vunpack.c.l.b16 %v393
        %v874 = vunpack.c.h.b16 %v393
        %v875 = vunpack.c.l.b16 %v394
        %v876 = vunpack.c.h.b16 %v394
        %v877 = vunpack.c.l.b16 %v395
        %v878 = vunpack.c.h.b16 %v395
        %v879 = vunpack.c.l.b16 %v396
        %v880 = vunpack.c.h.b16 %v396
        %v881 = vunpack.c.l.b16 %v397
        %v882 = vunpack.c.h.b16 %v397
        %v883 = vunpack.c.l.b16 %v398
        %v884 = vunpack.c.h.b16 %v398
        %v885 = vunpack.c.l.b16 %v399
        %v886 = vunpack.c.h.b16 %v399
        %v887 = vunpack.c.l.b16 %v400
        %v888 = vunpack.c.h.b16 %v400
        %v889 = vunpack.c.l.b16 %v401
        %v890 = vunpack.c.h.b16 %v401
        %v891 = vunpack.c.l.b16 %v402
        %v892 = vunpack.c.h.b16 %v402
        %v893 = vunpack.c.l.b16 %v403
        %v894 = vunpack.c.h.b16 %v403
        %v895 = vunpack.c.l.b16 %v404
        %v896 = vunpack.c.h.b16 %v404
        %v897 = vunpack.c.l.b16 %v405
        %v898 = vunpack.c.h.b16 %v405
        %v899 = vunpack.c.l.b16 %v406
        %v900 = vunpack.c.h.b16 %v406
        %v901 = vunpack.c.l.b16 %v407
        %v902 = vunpack.c.h.b16 %v407
        %v903 = vunpack.c.l.b16 %v408
        %v904 = vunpack.c.h.b16 %v408
        %v905 = vunpack.c.l.b16 %v409
        %v906 = vunpack.c.h.b16 %v409
        %v907 = vunpack.c.l.b16 %v410
        %v908 = vunpack.c.h.b16 %v410
        %v909 = vunpack.c.l.b16 %v411
        %v910 = vunpack.c.h.b16 %v411
        %v911 = vunpack.c.l.b16 %v412
        %v912 = vunpack.c.h.b16 %v412
        %v913 = vunpack.c.l.b16 %v413
        %v914 = vunpack.c.h.b16 %v413
        %v915 = vunpack.c.l.b16 %v414
        %v916 = vunpack.c.h.b16 %v414
        %v917 = vunpack.c.l.b16 %v415
        %v918 = vunpack.c.h.b16 %v415
        %v919 = vunpack.c.l.b16 %v416
        %v920 = vunpack.c.h.b16 %v416
        %v921 = vunpack.c.l.b16 %v417
        %v922 = vunpack.c.h.b16 %v417
        %v923 = vunpack.c.l.b16 %v418
        %v924 = vunpack.c.h.b16 %v418
        %v925 = vunpack.c.l.b16 %v419
        %v926 = vunpack.c.h.b16 %v419
        %v927 = vunpack.c.l.b16 %v420
        %v928 = vunpack.c.h.b16 %v420
        %v929 = vunpack.c.l.b16 %v421
        %v930 = vunpack.c.h.b16 %v421
        %v931 = vunpack.c.l.b16 %v422
        %v932 = vunpack.c.h.b16 %v422
        %v933 = vunpack.c.l.b16 %v423
        %v934 = vunpack.c.h.b16 %v423
        %v935 = vunpack.c.l.b16 %v424
        %v936 = vunpack.c.h.b16 %v424
        %v937 = vunpack.c.l.b16 %v425
        %v938 = vunpack.c.h.b16 %v425
        %v939 = vunpack.c.l.b16 %v426
        %v940 = vunpack.c.h.b16 %v426
        %v941 = vunpack.c.l.b16 %v427
        %v942 = vunpack.c.h.b16 %v427
        %v943 = vunpack.c.l.b16 %v428
        %v944 = vunpack.c.h.b16 %v428
        %v945 = vunpack.c.l.b16 %v429
        %v946 = vunpack.c.h.b16 %v429
        %v947 = vunpack.c.l.b16 %v430
        %v948 = vunpack.c.h.b16 %v430
        %v949 = vunpack.c.l.b16 %v431
        %v950 = vunpack.c.h.b16 %v431
        %v951 = vunpack.c.l.b16 %v432
        %v952 = vunpack.c.h.b16 %v432
        %v953 = vunpack.c.l.b16 %v433
        %v954 = vunpack.c.h.b16 %v433
        %v955 = vunpack.c.l.b16 %v434
        %v956 = vunpack.c.h.b16 %v434
        %v957 = vunpack.c.l.b16 %v435
        %v958 = vunpack.c.h.b16 %v435
        %v959 = vunpack.c.l.b16 %v436
        %v960 = vunpack.c.h.b16 %v436
        %v961 = vunpack.c.l.b16 %v437
        %v962 = vunpack.c.h.b16 %v437
        %v963 = vunpack.c.l.b16 %v438
        %v964 = vunpack.c.h.b16 %v438
        %v965 = vunpack.c.l.b16 %v439
        %v966 = vunpack.c.h.b16 %v439
        %v967 = vunpack.c.l.b16 %v440
        %v968 = vunpack.c.h.b16 %v440
        %v969 = vunpack.c.l.b16 %v441
        %v970 = vunpack.c.h.b16 %v441
        %v971 = vunpack.c.l.b16 %v442
        %v972 = vunpack.c.h.b16 %v442
        %v973 = vunpack.c.l.b16 %v443
        %v974 = vunpack.c.h.b16 %v443
        %v975 = vunpack.c.l.b16 %v444
        %v976 = vunpack.c.h.b16 %v444
        %v977 = vunpack.c.l.b16 %v445
        %v978 = vunpack.c.h.b16 %v445
        %v979 = vunpack.c.l.b16 %v446
        %v980 = vunpack.c.h.b16 %v446
        %v981 = vunpack.c.l.b16 %v447
        %v982 = vunpack.c.h.b16 %v447
        %v983 = vunpack.c.l.b16 %v448
        %v984 = vunpack.c.h.b16 %v448
        %v985 = vunpack.c.l.b16 %v449
        %v986 = vunpack.c.h.b16 %v449
        %v987 = vunpack.c.l.b16 %v450
        %v988 = vunpack.c.h.b16 %v450
        %v989 = vunpack.c.l.b16 %v451
        %v990 = vunpack.c.h.b16 %v451
        %v991 = vunpack.c.l.b16 %v452
        %v992 = vunpack.c.h.b16 %v452
        %v993 = vunpack.c.l.b16 %v453
        %v994 = vunpack.c.h.b16 %v453
        %v995 = vunpack.c.l.b16 %v454
        %v996 = vunpack.c.h.b16 %v454
        %v997 = vunpack.c.l.b16 %v455
        %v998 = vunpack.c.h.b16 %v455
        %v999 = vunpack.c.l.b16 %v456
        %v1000 = vunpack.c.h.b16 %v456
        %v1001 = vunpack.c.l.b16 %v457
        %v1002 = vunpack.c.h.b16 %v457
        %v1003 = vunpack.c.l.b16 %v458
        %v1004 = vunpack.c.h.b16 %v458
        %v1005 = vunpack.c.l.b16 %v459
        %v1006 = vunpack.c.h.b16 %v459
        %v1007 = vunpack.c.l.b16 %v460
        %v1008 = vunpack.c.h.b16 %v460
        %v1009 = vunpack.c.l.b16 %v461
        %v1010 = vunpack.c.h.b16 %v461
        %v1011 = vunpack.c.l.b16 %v462
        %v1012 = vunpack.c.h.b16 %v462
        %v1013 = vunpack.c.l.b16 %v463
        %v1014 = vunpack.c.h.b16 %v463
        %v1015 = vunpack.c.l.b16 %v464
        %v1016 = vunpack.c.h.b16 %v464
        %v1017 = vunpack.c.l.b16 %v465
        %v1018 = vunpack.c.h.b16 %v465
        %v1019 = vunpack.c.l.b16 %v466
        %v1020 = vunpack.c.h.b16 %v466
        %v1021 = vunpack.c.l.b16 %v467
        %v1022 = vunpack.c.h.b16 %v467
        %v1023 = vunpack.c.l.b16 %v468
        %v1024 = vunpack.c.h.b16 %v468
        %v1025 = vunpack.c.l.b16 %v469
        %v1026 = vunpack.c.h.b16 %v469
        %v1027 = vunpack.c.l.b16 %v470
        %v1028 = vunpack.c.h.b16 %v470
        %v1029 = vunpack.c.l.b16 %v471
        %v1030 = vunpack.c.h.b16 %v471
        %v1031 = vunpack.c.l.b16 %v472
        %v1032 = vunpack.c.h.b16 %v472
        %v1033 = vunpack.c.l.b16 %v473
        %v1034 = vunpack.c.h.b16 %v473
        %v1035 = vunpack.c.l.b16 %v474
        %v1036 = vunpack.c.h.b16 %v474
        %v1037 = vunpack.c.l.b16 %v475
        %v1038 = vunpack.c.h.b16 %v475
        %v1039 = vunpack.c.l.b16 %v476
        %v1040 = vunpack.c.h.b16 %v476
        %v1041 = vunpack.c.l.b16 %v477
        %v1042 = vunpack.c.h.b16 %v477
        %v1043 = vunpack.c.l.b16 %v478
        %v1044 = vunpack.c.h.b16 %v478
        %v1045 = vunpack.c.l.b16 %v479
        %v1046 = vunpack.c.h.b16 %v479
        %v1047 = vunpack.c.l.b16 %v480
        %v1048 = vunpack.c.h.b16 %v480
        %v1049 = vunpack.c.l.b16 %v481
        %v1050 = vunpack.c.h.b16 %v481
        %v1051 = vunpack.c.l.b16 %v482
        %v1052 = vunpack.c.h.b16 %v482
        %v1053 = vunpack.c.l.b16 %v483
        %v1054 = vunpack.c.h.b16 %v483
        %v1055 = vunpack.c.l.b16 %v484
        %v1056 = vunpack.c.h.b16 %v484
        %v1057 = vunpack.c.l.b16 %v485
        %v1058 = vunpack.c.h.b16 %v485
        %v1059 = vunpack.c.l.b16 %v486
        %v1060 = vunpack.c.h.b16 %v486
        %v1061 = vunpack.c.l.b16 %v487
        %v1062 = vunpack.c.h.b16 %v487
        %v1063 = vunpack.c.l.b16 %v488
        %v1064 = vunpack.c.h.b16 %v488
        %v1065 = vpack.c.b16 %v687, %v681
        %v1066 = vpack.c.b16 %v688, %v682
        %v1067 = vpack.c.b16 %v689, %v683
        %v1068 = vpack.c.b16 %v690, %v684
        %v1069 = vpack.c.b16 %v691, %v685
        %v1070 = vpack.c.b16 %v692, %v686
        %v1071 = vpack.c.b16 %v699, %v693
        %v1072 = vpack.c.b16 %v700, %v694
        %v1073 = vpack.c.b16 %v701, %v695
        %v1074 = vpack.c.b16 %v702, %v696
        %v1075 = vpack.c.b16 %v703, %v697
        %v1076 = vpack.c.b16 %v704, %v698
        %v1077 = vpack.c.b16 %v711, %v705
        %v1078 = vpack.c.b16 %v712, %v706
        %v1079 = vpack.c.b16 %v713, %v707
        %v1080 = vpack.c.b16 %v714, %v708
        %v1081 = vpack.c.b16 %v715, %v709
        %v1082 = vpack.c.b16 %v716, %v710
        %v1083 = vpack.c.b16 %v723, %v717
        %v1084 = vpack.c.b16 %v724, %v718
        %v1085 = vpack.c.b16 %v725, %v719
        %v1086 = vpack.c.b16 %v726, %v720
        %v1087 = vpack.c.b16 %v727, %v721
        %v1088 = vpack.c.b16 %v728, %v722
        %v1089 = vpack.c.b16 %v735, %v729
        %v1090 = vpack.c.b16 %v736, %v730
        %v1091 = vpack.c.b16 %v737, %v731
        %v1092 = vpack.c.b16 %v738, %v732
        %v1093 = vpack.c.b16 %v739, %v733
        %v1094 = vpack.c.b16 %v740, %v734
        %v1095 = vpack.c.b16 %v747, %v741
        %v1096 = vpack.c.b16 %v748, %v742
        %v1097 = vpack.c.b16 %v749, %v743
        %v1098 = vpack.c.b16 %v750, %v744
        %v1099 = vpack.c.b16 %v751, %v745
        %v1100 = vpack.c.b16 %v752, %v746
        %v1101 = vpack.c.b16 %v759, %v753
        %v1102 = vpack.c.b16 %v760, %v754
        %v1103 = vpack.c.b16 %v761, %v755
        %v1104 = vpack.c.b16 %v762, %v756
        %v1105 = vpack.c.b16 %v763, %v757
        %v1106 = vpack.c.b16 %v764, %v758
        %v1107 = vpack.c.b16 %v771, %v765
        %v1108 = vpack.c.b16 %v772, %v766
        %v1109 = vpack.c.b16 %v773, %v767
        %v1110 = vpack.c.b16 %v774, %v768
        %v1111 = vpack.c.b16 %v775, %v769
        %v1112 = vpack.c.b16 %v776, %v770
        %v1113 = vpack.c.b16 %v783, %v777
        %v1114 = vpack.c.b16 %v784, %v778
        %v1115 = vpack.c.b16 %v785, %v779
        %v1116 = vpack.c.b16 %v786, %v780
        %v1117 = vpack.c.b16 %v787, %v781
        %v1118 = vpack.c.b16 %v788, %v782
        %v1119 = vpack.c.b16 %v795, %v789
        %v1120 = vpack.c.b16 %v796, %v790
        %v1121 = vpack.c.b16 %v797, %v791
        %v1122 = vpack.c.b16 %v798, %v792
        %v1123 = vpack.c.b16 %v799, %v793
        %v1124 = vpack.c.b16 %v800, %v794
        %v1125 = vpack.c.b16 %v807, %v801
        %v1126 = vpack.c.b16 %v808, %v802
        %v1127 = vpack.c.b16 %v809, %v803
        %v1128 = vpack.c.b16 %v810, %v804
        %v1129 = vpack.c.b16 %v811, %v805
        %v1130 = vpack.c.b16 %v812, %v806
        %v1131 = vpack.c.b16 %v819, %v813
        %v1132 = vpack.c.b16 %v820, %v814
        %v1133 = vpack.c.b16 %v821, %v815
        %v1134 = vpack.c.b16 %v822, %v816
        %v1135 = vpack.c.b16 %v823, %v817
        %v1136 = vpack.c.b16 %v824, %v818
        %v1137 = vpack.c.b16 %v831, %v825
        %v1138 = vpack.c.b16 %v832, %v826
        %v1139 = vpack.c.b16 %v833, %v827
        %v1140 = vpack.c.b16 %v834, %v828
        %v1141 = vpack.c.b16 %v835, %v829
        %v1142 = vpack.c.b16 %v836, %v830
        %v1143 = vpack.c.b16 %v843, %v837
        %v1144 = vpack.c.b16 %v844, %v838
        %v1145 = vpack.c.b16 %v845, %v839
        %v1146 = vpack.c.b16 %v846, %v840
        %v1147 = vpack.c.b16 %v847, %v841
        %v1148 = vpack.c.b16 %v848, %v842
        %v1149 = vpack.c.b16 %v855, %v849
        %v1150 = vpack.c.b16 %v856, %v850
        %v1151 = vpack.c.b16 %v857, %v851
        %v1152 = vpack.c.b16 %v858, %v852
        %v1153 = vpack.c.b16 %v859, %v853
        %v1154 = vpack.c.b16 %v860, %v854
        %v1155 = vpack.c.b16 %v867, %v861
        %v1156 = vpack.c.b16 %v868, %v862
        %v1157 = vpack.c.b16 %v869, %v863
        %v1158 = vpack.c.b16 %v870, %v864
        %v1159 = vpack.c.b16 %v871, %v865
        %v1160 = vpack.c.b16 %v872, %v866
        %v1161 = vpack.c.b16 %v879, %v873
        %v1162 = vpack.c.b16 %v880, %v874
        %v1163 = vpack.c.b16 %v881, %v875
        %v1164 = vpack.c.b16 %v882, %v876
        %v1165 = vpack.c.b16 %v883, %v877
        %v1166 = vpack.c.b16 %v884, %v878
        %v1167 = vpack.c.b16 %v891, %v885
        %v1168 = vpack.c.b16 %v892, %v886
        %v1169 = vpack.c.b16 %v893, %v887
        %v1170 = vpack.c.b16 %v894, %v888
        %v1171 = vpack.c.b16 %v895, %v889
        %v1172 = vpack.c.b16 %v896, %v890
        %v1173 = vpack.c.b16 %v903, %v897
        %v1174 = vpack.c.b16 %v904, %v898
        %v1175 = vpack.c.b16 %v905, %v899
        %v1176 = vpack.c.b16 %v906, %v900
        %v1177 = vpack.c.b16 %v907, %v901
        %v1178 = vpack.c.b16 %v908, %v902
        %v1179 = vpack.c.b16 %v915, %v909
        %v1180 = vpack.c.b16 %v916, %v910
        %v1181 = vpack.c.b16 %v917, %v911
        %v1182 = vpack.c.b16 %v918, %v912
        %v1183 = vpack.c.b16 %v919, %v913
        %v1184 = vpack.c.b16 %v920, %v914
        %v1185 = vpack.c.b16 %v927, %v921
        %v1186 = vpack.c.b16 %v928, %v922
        %v1187 = vpack.c.b16 %v929, %v923
        %v1188 = vpack.c.b16 %v930, %v924
        %v1189 = vpack.c.b16 %v931, %v925
        %v1190 = vpack.c.b16 %v932, %v926
        %v1191 = vpack.c.b16 %v939, %v933
        %v1192 = vpack.c.b16 %v940, %v934
        %v1193 = vpack.c.b16 %v941, %v935
        %v1194 = vpack.c.b16 %v942, %v936
        %v1195 = vpack.c.b16 %v943, %v937
        %v1196 = vpack.c.b16 %v944, %v938
        %v1197 = vpack.c.b16 %v951, %v945
        %v1198 = vpack.c.b16 %v952, %v946
        %v1199 = vpack.c.b16 %v953, %v947
        %v1200 = vpack.c.b16 %v954, %v948
        %v1201 = vpack.c.b16 %v955, %v949
        %v1202 = vpack.c.b16 %v956, %v950
        %v1203 = vpack.c.b16 %v963, %v957
        %v1204 = vpack.c.b16 %v964, %v958
        %v1205 = vpack.c.b16 %v965, %v959
        %v1206 = vpack.c.b16 %v966, %v960
        %v1207 = vpack.c.b16 %v967, %v961
        %v1208 = vpack.c.b16 %v968, %v962
        %v1209 = vpack.c.b16 %v975, %v969
        %v1210 = vpack.c.b16 %v976, %v970
        %v1211 = vpack.c.b16 %v977, %v971
        %v1212 = vpack.c.b16 %v978, %v972
        %v1213 = vpack.c.b16 %v979, %v973
        %v1214 = vpack.c.b16 %v980, %v974
        %v1215 = vpack.c.b16 %v987, %v981
        %v1216 = vpack.c.b16 %v988, %v982
        %v1217 = vpack.c.b16 %v989, %v983
        %v1218 = vpack.c.b16 %v990, %v984
        %v1219 = vpack.c.b16 %v991, %v985
        %v1220 = vpack.c.b16 %v992, %v986
        %v1221 = vpack.c.b16 %v999, %v993
        %v1222 = vpack.c.b16 %v1000, %v994
        %v1223 = vpack.c.b16 %v1001, %v995
        %v1224 = vpack.c.b16 %v1002, %v996
        %v1225 = vpack.c.b16 %v1003, %v997
        %v1226 = vpack.c.b16 %v1004, %v998
        %v1227 = vpack.c.b16 %v1011, %v1005
        %v1228 = vpack.c.b16 %v1012, %v1006
        %v1229 = vpack.c.b16 %v1013, %v1007
        %v1230 = vpack.c.b16 %v1014, %v1008
        %v1231 = vpack.c.b16 %v1015, %v1009
        %v1232 = vpack.c.b16 %v1016, %v1010
        %v1233 = vpack.c.b16 %v1023, %v1017
        %v1234 = vpack.c.b16 %v1024, %v1018
        %v1235 = vpack.c.b16 %v1025, %v1019
        %v1236 = vpack.c.b16 %v1026, %v1020
        %v1237 = vpack.c.b16 %v1027, %v1021
        %v1238 = vpack.c.b16 %v1028, %v1022
        %v1239 = vpack.c.b16 %v1035, %v1029
        %v1240 = vpack.c.b16 %v1036, %v1030
        %v1241 = vpack.c.b16 %v1037, %v1031
        %v1242 = vpack.c.b16 %v1038, %v1032
        %v1243 = vpack.c.b16 %v1039, %v1033
        %v1244 = vpack.c.b16 %v1040, %v1034
        %v1245 = vpack.c.b16 %v1047, %v1041
        %v1246 = vpack.c.b16 %v1048, %v1042
        %v1247 = vpack.c.b16 %v1049, %v1043
        %v1248 = vpack.c.b16 %v1050, %v1044
        %v1249 = vpack.c.b16 %v1051, %v1045
        %v1250 = vpack.c.b16 %v1052, %v1046
        %v1251 = vpack.c.b16 %v1059, %v1053
        %v1252 = vpack.c.b16 %v1060, %v1054
        %v1253 = vpack.c.b16 %v1061, %v1055
        %v1254 = vpack.c.b16 %v1062, %v1056
        %v1255 = vpack.c.b16 %v1063, %v1057
        %v1256 = vpack.c.b16 %v1064, %v1058
        %1449 = vmatpush.bf16.msra.mxu0 %v1107
        %1450 = vmatpush.bf16.msra.mxu0 %v1101
        %1451 = vmatpush.bf16.msra.mxu0 %v1095
        %1452 = vmatpush.bf16.msra.mxu0 %v1089
        %1453 = vmatpush.bf16.msra.mxu0 %v1083
        %1454 = vmatpush.bf16.msra.mxu0 %v1077
        %1455 = vmatpush.bf16.msra.mxu0 %v1071
        %1456 = vmatpush.bf16.msra.mxu0 %v1065
        %1457 = vmatmul.bf16.gmra.mxu0 %v289
        %v1458 = vpop.f32.mrf.mxu0
        %v1459 = vadd.f32 0.0, %v1458
        %v1460 = vpop.f32.mrf.mxu0
        %v1461 = vadd.f32 0.0, %v1460
        %1462 = vmatmul.bf16.gmra.mxu0 %v293
        %v1463 = vpop.f32.mrf.mxu0
        %v1464 = vadd.f32 0.0, %v1463
        %v1465 = vpop.f32.mrf.mxu0
        %v1466 = vadd.f32 0.0, %v1465
        %1467 = vdwg.mxu0
        %1468 = vmatpush.bf16.msra.mxu0 %v1155
        %1469 = vmatpush.bf16.msra.mxu0 %v1149
        %1470 = vmatpush.bf16.msra.mxu0 %v1143
        %1471 = vmatpush.bf16.msra.mxu0 %v1137
        %1472 = vmatpush.bf16.msra.mxu0 %v1131
        %1473 = vmatpush.bf16.msra.mxu0 %v1125
        %1474 = vmatpush.bf16.msra.mxu0 %v1119
        %1475 = vmatpush.bf16.msra.mxu0 %v1113
        %1476 = vmatmul.bf16.gmra.mxu0 %v290
        %v1477 = vpop.f32.mrf.mxu0
        %v1478 = vadd.f32 %v1459, %v1477
        %v1479 = vpop.f32.mrf.mxu0
        %v1480 = vadd.f32 %v1461, %v1479
        %1481 = vmatmul.bf16.gmra.mxu0 %v294
        %v1482 = vpop.f32.mrf.mxu0
        %v1483 = vadd.f32 %v1464, %v1482
        %v1484 = vpop.f32.mrf.mxu0
        %v1485 = vadd.f32 %v1466, %v1484
        %1486 = vdwg.mxu0
        %1487 = vmatpush.bf16.msra.mxu0 %v1203
        %1488 = vmatpush.bf16.msra.mxu0 %v1197
        %1489 = vmatpush.bf16.msra.mxu0 %v1191
        %1490 = vmatpush.bf16.msra.mxu0 %v1185
        %1491 = vmatpush.bf16.msra.mxu0 %v1179
        %1492 = vmatpush.bf16.msra.mxu0 %v1173
        %1493 = vmatpush.bf16.msra.mxu0 %v1167
        %1494 = vmatpush.bf16.msra.mxu0 %v1161
        %1495 = vmatmul.bf16.gmra.mxu0 %v291
        %v1496 = vpop.f32.mrf.mxu0
        %v1497 = vadd.f32 %v1478, %v1496
        %v1498 = vpop.f32.mrf.mxu0
        %v1499 = vadd.f32 %v1480, %v1498
        %1500 = vmatmul.bf16.gmra.mxu0 %v295
        %v1501 = vpop.f32.mrf.mxu0
        %v1502 = vadd.f32 %v1483, %v1501
        %v1503 = vpop.f32.mrf.mxu0
        %v1504 = vadd.f32 %v1485, %v1503
        %1505 = vdwg.mxu0
        %1506 = vmatpush.bf16.msra.mxu0 %v1251
        %1507 = vmatpush.bf16.msra.mxu0 %v1245
        %1508 = vmatpush.bf16.msra.mxu0 %v1239
        %1509 = vmatpush.bf16.msra.mxu0 %v1233
        %1510 = vmatpush.bf16.msra.mxu0 %v1227
        %1511 = vmatpush.bf16.msra.mxu0 %v1221
        %1512 = vmatpush.bf16.msra.mxu0 %v1215
        %1513 = vmatpush.bf16.msra.mxu0 %v1209
        %1514 = vmatmul.bf16.gmra.mxu0 %v292
        %v1515 = vpop.f32.mrf.mxu0
        %v1516 = vadd.f32 %v1497, %v1515
        %v1517 = vpop.f32.mrf.mxu0
        %v1518 = vadd.f32 %v1499, %v1517
        %1519 = vmatmul.bf16.gmra.mxu0 %v296
        %v1520 = vpop.f32.mrf.mxu0
        %v1521 = vadd.f32 %v1502, %v1520
        %v1522 = vpop.f32.mrf.mxu0
        %v1523 = vadd.f32 %v1504, %v1522
        %1524 = vdwg.mxu0
        %1525 = vmatpush.bf16.msra.mxu0 %v1108
        %1526 = vmatpush.bf16.msra.mxu0 %v1102
        %1527 = vmatpush.bf16.msra.mxu0 %v1096
        %1528 = vmatpush.bf16.msra.mxu0 %v1090
        %1529 = vmatpush.bf16.msra.mxu0 %v1084
        %1530 = vmatpush.bf16.msra.mxu0 %v1078
        %1531 = vmatpush.bf16.msra.mxu0 %v1072
        %1532 = vmatpush.bf16.msra.mxu0 %v1066
        %1533 = vmatmul.bf16.gmra.mxu0 %v289
        %v1534 = vpop.f32.mrf.mxu0
        %v1535 = vadd.f32 0.0, %v1534
        %v1536 = vpop.f32.mrf.mxu0
        %v1537 = vadd.f32 0.0, %v1536
        %1538 = vmatmul.bf16.gmra.mxu0 %v293
        %v1539 = vpop.f32.mrf.mxu0
        %v1540 = vadd.f32 0.0, %v1539
        %v1541 = vpop.f32.mrf.mxu0
        %v1542 = vadd.f32 0.0, %v1541
        %1543 = vdwg.mxu0
        %1544 = vmatpush.bf16.msra.mxu0 %v1156
        %1545 = vmatpush.bf16.msra.mxu0 %v1150
        %1546 = vmatpush.bf16.msra.mxu0 %v1144
        %1547 = vmatpush.bf16.msra.mxu0 %v1138
        %1548 = vmatpush.bf16.msra.mxu0 %v1132
        %1549 = vmatpush.bf16.msra.mxu0 %v1126
        %1550 = vmatpush.bf16.msra.mxu0 %v1120
        %1551 = vmatpush.bf16.msra.mxu0 %v1114
        %1552 = vmatmul.bf16.gmra.mxu0 %v290
        %v1553 = vpop.f32.mrf.mxu0
        %v1554 = vadd.f32 %v1535, %v1553
        %v1555 = vpop.f32.mrf.mxu0
        %v1556 = vadd.f32 %v1537, %v1555
        %1557 = vmatmul.bf16.gmra.mxu0 %v294
        %v1558 = vpop.f32.mrf.mxu0
        %v1559 = vadd.f32 %v1540, %v1558
        %v1560 = vpop.f32.mrf.mxu0
        %v1561 = vadd.f32 %v1542, %v1560
        %1562 = vdwg.mxu0
        %1563 = vmatpush.bf16.msra.mxu0 %v1204
        %1564 = vmatpush.bf16.msra.mxu0 %v1198
        %1565 = vmatpush.bf16.msra.mxu0 %v1192
        %1566 = vmatpush.bf16.msra.mxu0 %v1186
        %1567 = vmatpush.bf16.msra.mxu0 %v1180
        %1568 = vmatpush.bf16.msra.mxu0 %v1174
        %1569 = vmatpush.bf16.msra.mxu0 %v1168
        %1570 = vmatpush.bf16.msra.mxu0 %v1162
        %1571 = vmatmul.bf16.gmra.mxu0 %v291
        %v1572 = vpop.f32.mrf.mxu0
        %v1573 = vadd.f32 %v1554, %v1572
        %v1574 = vpop.f32.mrf.mxu0
        %v1575 = vadd.f32 %v1556, %v1574
        %1576 = vmatmul.bf16.gmra.mxu0 %v295
        %v1577 = vpop.f32.mrf.mxu0
        %v1578 = vadd.f32 %v1559, %v1577
        %v1579 = vpop.f32.mrf.mxu0
        %v1580 = vadd.f32 %v1561, %v1579
        %1581 = vdwg.mxu0
        %1582 = vmatpush.bf16.msra.mxu0 %v1252
        %1583 = vmatpush.bf16.msra.mxu0 %v1246
        %1584 = vmatpush.bf16.msra.mxu0 %v1240
        %1585 = vmatpush.bf16.msra.mxu0 %v1234
        %1586 = vmatpush.bf16.msra.mxu0 %v1228
        %1587 = vmatpush.bf16.msra.mxu0 %v1222
        %1588 = vmatpush.bf16.msra.mxu0 %v1216
        %1589 = vmatpush.bf16.msra.mxu0 %v1210
        %1590 = vmatmul.bf16.gmra.mxu0 %v292
        %v1591 = vpop.f32.mrf.mxu0
        %v1592 = vadd.f32 %v1573, %v1591
        %v1593 = vpop.f32.mrf.mxu0
        %v1594 = vadd.f32 %v1575, %v1593
        %1595 = vmatmul.bf16.gmra.mxu0 %v296
        %v1596 = vpop.f32.mrf.mxu0
        %v1597 = vadd.f32 %v1578, %v1596
        %v1598 = vpop.f32.mrf.mxu0
        %v1599 = vadd.f32 %v1580, %v1598
        %1600 = vdwg.mxu0
        %1601 = vmatpush.bf16.msra.mxu0 %v1109
        %1602 = vmatpush.bf16.msra.mxu0 %v1103
        %1603 = vmatpush.bf16.msra.mxu0 %v1097
        %1604 = vmatpush.bf16.msra.mxu0 %v1091
        %1605 = vmatpush.bf16.msra.mxu0 %v1085
        %1606 = vmatpush.bf16.msra.mxu0 %v1079
        %1607 = vmatpush.bf16.msra.mxu0 %v1073
        %1608 = vmatpush.bf16.msra.mxu0 %v1067
        %1609 = vmatmul.bf16.gmra.mxu0 %v289
        %v1610 = vpop.f32.mrf.mxu0
        %v1611 = vadd.f32 0.0, %v1610
        %v1612 = vpop.f32.mrf.mxu0
        %v1613 = vadd.f32 0.0, %v1612
        %1614 = vmatmul.bf16.gmra.mxu0 %v293
        %v1615 = vpop.f32.mrf.mxu0
        %v1616 = vadd.f32 0.0, %v1615
        %v1617 = vpop.f32.mrf.mxu0
        %v1618 = vadd.f32 0.0, %v1617
        %1619 = vdwg.mxu0
        %1620 = vmatpush.bf16.msra.mxu0 %v1157
        %1621 = vmatpush.bf16.msra.mxu0 %v1151
        %1622 = vmatpush.bf16.msra.mxu0 %v1145
        %1623 = vmatpush.bf16.msra.mxu0 %v1139
        %1624 = vmatpush.bf16.msra.mxu0 %v1133
        %1625 = vmatpush.bf16.msra.mxu0 %v1127
        %1626 = vmatpush.bf16.msra.mxu0 %v1121
        %1627 = vmatpush.bf16.msra.mxu0 %v1115
        %1628 = vmatmul.bf16.gmra.mxu0 %v290
        %v1629 = vpop.f32.mrf.mxu0
        %v1630 = vadd.f32 %v1611, %v1629
        %v1631 = vpop.f32.mrf.mxu0
        %v1632 = vadd.f32 %v1613, %v1631
        %1633 = vmatmul.bf16.gmra.mxu0 %v294
        %v1634 = vpop.f32.mrf.mxu0
        %v1635 = vadd.f32 %v1616, %v1634
        %v1636 = vpop.f32.mrf.mxu0
        %v1637 = vadd.f32 %v1618, %v1636
        %1638 = vdwg.mxu0
        %1639 = vmatpush.bf16.msra.mxu0 %v1205
        %1640 = vmatpush.bf16.msra.mxu0 %v1199
        %1641 = vmatpush.bf16.msra.mxu0 %v1193
        %1642 = vmatpush.bf16.msra.mxu0 %v1187
        %1643 = vmatpush.bf16.msra.mxu0 %v1181
        %1644 = vmatpush.bf16.msra.mxu0 %v1175
        %1645 = vmatpush.bf16.msra.mxu0 %v1169
        %1646 = vmatpush.bf16.msra.mxu0 %v1163
        %1647 = vmatmul.bf16.gmra.mxu0 %v291
        %v1648 = vpop.f32.mrf.mxu0
        %v1649 = vadd.f32 %v1630, %v1648
        %v1650 = vpop.f32.mrf.mxu0
        %v1651 = vadd.f32 %v1632, %v1650
        %1652 = vmatmul.bf16.gmra.mxu0 %v295
        %v1653 = vpop.f32.mrf.mxu0
        %v1654 = vadd.f32 %v1635, %v1653
        %v1655 = vpop.f32.mrf.mxu0
        %v1656 = vadd.f32 %v1637, %v1655
        %1657 = vdwg.mxu0
        %1658 = vmatpush.bf16.msra.mxu0 %v1253
        %1659 = vmatpush.bf16.msra.mxu0 %v1247
        %1660 = vmatpush.bf16.msra.mxu0 %v1241
        %1661 = vmatpush.bf16.msra.mxu0 %v1235
        %1662 = vmatpush.bf16.msra.mxu0 %v1229
        %1663 = vmatpush.bf16.msra.mxu0 %v1223
        %1664 = vmatpush.bf16.msra.mxu0 %v1217
        %1665 = vmatpush.bf16.msra.mxu0 %v1211
        %1666 = vmatmul.bf16.gmra.mxu0 %v292
        %v1667 = vpop.f32.mrf.mxu0
        %v1668 = vadd.f32 %v1649, %v1667
        %v1669 = vpop.f32.mrf.mxu0
        %v1670 = vadd.f32 %v1651, %v1669
        %1671 = vmatmul.bf16.gmra.mxu0 %v296
        %v1672 = vpop.f32.mrf.mxu0
        %v1673 = vadd.f32 %v1654, %v1672
        %v1674 = vpop.f32.mrf.mxu0
        %v1675 = vadd.f32 %v1656, %v1674
        %1676 = vdwg.mxu0
        %1677 = vmatpush.bf16.msra.mxu0 %v1110
        %1678 = vmatpush.bf16.msra.mxu0 %v1104
        %1679 = vmatpush.bf16.msra.mxu0 %v1098
        %1680 = vmatpush.bf16.msra.mxu0 %v1092
        %1681 = vmatpush.bf16.msra.mxu0 %v1086
        %1682 = vmatpush.bf16.msra.mxu0 %v1080
        %1683 = vmatpush.bf16.msra.mxu0 %v1074
        %1684 = vmatpush.bf16.msra.mxu0 %v1068
        %1685 = vmatmul.bf16.gmra.mxu0 %v289
        %v1686 = vpop.f32.mrf.mxu0
        %v1687 = vadd.f32 0.0, %v1686
        %v1688 = vpop.f32.mrf.mxu0
        %v1689 = vadd.f32 0.0, %v1688
        %1690 = vmatmul.bf16.gmra.mxu0 %v293
        %v1691 = vpop.f32.mrf.mxu0
        %v1692 = vadd.f32 0.0, %v1691
        %v1693 = vpop.f32.mrf.mxu0
        %v1694 = vadd.f32 0.0, %v1693
        %1695 = vdwg.mxu0
        %1696 = vmatpush.bf16.msra.mxu0 %v1158
        %1697 = vmatpush.bf16.msra.mxu0 %v1152
        %1698 = vmatpush.bf16.msra.mxu0 %v1146
        %1699 = vmatpush.bf16.msra.mxu0 %v1140
        %1700 = vmatpush.bf16.msra.mxu0 %v1134
        %1701 = vmatpush.bf16.msra.mxu0 %v1128
        %1702 = vmatpush.bf16.msra.mxu0 %v1122
        %1703 = vmatpush.bf16.msra.mxu0 %v1116
        %1704 = vmatmul.bf16.gmra.mxu0 %v290
        %v1705 = vpop.f32.mrf.mxu0
        %v1706 = vadd.f32 %v1687, %v1705
        %v1707 = vpop.f32.mrf.mxu0
        %v1708 = vadd.f32 %v1689, %v1707
        %1709 = vmatmul.bf16.gmra.mxu0 %v294
        %v1710 = vpop.f32.mrf.mxu0
        %v1711 = vadd.f32 %v1692, %v1710
        %v1712 = vpop.f32.mrf.mxu0
        %v1713 = vadd.f32 %v1694, %v1712
        %1714 = vdwg.mxu0
        %1715 = vmatpush.bf16.msra.mxu0 %v1206
        %1716 = vmatpush.bf16.msra.mxu0 %v1200
        %1717 = vmatpush.bf16.msra.mxu0 %v1194
        %1718 = vmatpush.bf16.msra.mxu0 %v1188
        %1719 = vmatpush.bf16.msra.mxu0 %v1182
        %1720 = vmatpush.bf16.msra.mxu0 %v1176
        %1721 = vmatpush.bf16.msra.mxu0 %v1170
        %1722 = vmatpush.bf16.msra.mxu0 %v1164
        %1723 = vmatmul.bf16.gmra.mxu0 %v291
        %v1724 = vpop.f32.mrf.mxu0
        %v1725 = vadd.f32 %v1706, %v1724
        %v1726 = vpop.f32.mrf.mxu0
        %v1727 = vadd.f32 %v1708, %v1726
        %1728 = vmatmul.bf16.gmra.mxu0 %v295
        %v1729 = vpop.f32.mrf.mxu0
        %v1730 = vadd.f32 %v1711, %v1729
        %v1731 = vpop.f32.mrf.mxu0
        %v1732 = vadd.f32 %v1713, %v1731
        %1733 = vdwg.mxu0
        %1734 = vmatpush.bf16.msra.mxu0 %v1254
        %1735 = vmatpush.bf16.msra.mxu0 %v1248
        %1736 = vmatpush.bf16.msra.mxu0 %v1242
        %1737 = vmatpush.bf16.msra.mxu0 %v1236
        %1738 = vmatpush.bf16.msra.mxu0 %v1230
        %1739 = vmatpush.bf16.msra.mxu0 %v1224
        %1740 = vmatpush.bf16.msra.mxu0 %v1218
        %1741 = vmatpush.bf16.msra.mxu0 %v1212
        %1742 = vmatmul.bf16.gmra.mxu0 %v292
        %v1743 = vpop.f32.mrf.mxu0
        %v1744 = vadd.f32 %v1725, %v1743
        %v1745 = vpop.f32.mrf.mxu0
        %v1746 = vadd.f32 %v1727, %v1745
        %1747 = vmatmul.bf16.gmra.mxu0 %v296
        %v1748 = vpop.f32.mrf.mxu0
        %v1749 = vadd.f32 %v1730, %v1748
        %v1750 = vpop.f32.mrf.mxu0
        %v1751 = vadd.f32 %v1732, %v1750
        %1752 = vdwg.mxu0
        %1753 = vmatpush.bf16.msra.mxu0 %v1111
        %1754 = vmatpush.bf16.msra.mxu0 %v1105
        %1755 = vmatpush.bf16.msra.mxu0 %v1099
        %1756 = vmatpush.bf16.msra.mxu0 %v1093
        %1757 = vmatpush.bf16.msra.mxu0 %v1087
        %1758 = vmatpush.bf16.msra.mxu0 %v1081
        %1759 = vmatpush.bf16.msra.mxu0 %v1075
        %1760 = vmatpush.bf16.msra.mxu0 %v1069
        %1761 = vmatmul.bf16.gmra.mxu0 %v289
        %v1762 = vpop.f32.mrf.mxu0
        %v1763 = vadd.f32 0.0, %v1762
        %v1764 = vpop.f32.mrf.mxu0
        %v1765 = vadd.f32 0.0, %v1764
        %1766 = vmatmul.bf16.gmra.mxu0 %v293
        %v1767 = vpop.f32.mrf.mxu0
        %v1768 = vadd.f32 0.0, %v1767
        %v1769 = vpop.f32.mrf.mxu0
        %v1770 = vadd.f32 0.0, %v1769
        %1771 = vdwg.mxu0
        %1772 = vmatpush.bf16.msra.mxu0 %v1159
        %1773 = vmatpush.bf16.msra.mxu0 %v1153
        %1774 = vmatpush.bf16.msra.mxu0 %v1147
        %1775 = vmatpush.bf16.msra.mxu0 %v1141
        %1776 = vmatpush.bf16.msra.mxu0 %v1135
        %1777 = vmatpush.bf16.msra.mxu0 %v1129
        %1778 = vmatpush.bf16.msra.mxu0 %v1123
        %1779 = vmatpush.bf16.msra.mxu0 %v1117
        %1780 = vmatmul.bf16.gmra.mxu0 %v290
        %v1781 = vpop.f32.mrf.mxu0
        %v1782 = vadd.f32 %v1763, %v1781
        %v1783 = vpop.f32.mrf.mxu0
        %v1784 = vadd.f32 %v1765, %v1783
        %1785 = vmatmul.bf16.gmra.mxu0 %v294
        %v1786 = vpop.f32.mrf.mxu0
        %v1787 = vadd.f32 %v1768, %v1786
        %v1788 = vpop.f32.mrf.mxu0
        %v1789 = vadd.f32 %v1770, %v1788
        %1790 = vdwg.mxu0
        %1791 = vmatpush.bf16.msra.mxu0 %v1207
        %1792 = vmatpush.bf16.msra.mxu0 %v1201
        %1793 = vmatpush.bf16.msra.mxu0 %v1195
        %1794 = vmatpush.bf16.msra.mxu0 %v1189
        %1795 = vmatpush.bf16.msra.mxu0 %v1183
        %1796 = vmatpush.bf16.msra.mxu0 %v1177
        %1797 = vmatpush.bf16.msra.mxu0 %v1171
        %1798 = vmatpush.bf16.msra.mxu0 %v1165
        %1799 = vmatmul.bf16.gmra.mxu0 %v291
        %v1800 = vpop.f32.mrf.mxu0
        %v1801 = vadd.f32 %v1782, %v1800
        %v1802 = vpop.f32.mrf.mxu0
        %v1803 = vadd.f32 %v1784, %v1802
        %1804 = vmatmul.bf16.gmra.mxu0 %v295
        %v1805 = vpop.f32.mrf.mxu0
        %v1806 = vadd.f32 %v1787, %v1805
        %v1807 = vpop.f32.mrf.mxu0
        %v1808 = vadd.f32 %v1789, %v1807
        %1809 = vdwg.mxu0
        %1810 = vmatpush.bf16.msra.mxu0 %v1255
        %1811 = vmatpush.bf16.msra.mxu0 %v1249
        %1812 = vmatpush.bf16.msra.mxu0 %v1243
        %1813 = vmatpush.bf16.msra.mxu0 %v1237
        %1814 = vmatpush.bf16.msra.mxu0 %v1231
        %1815 = vmatpush.bf16.msra.mxu0 %v1225
        %1816 = vmatpush.bf16.msra.mxu0 %v1219
        %1817 = vmatpush.bf16.msra.mxu0 %v1213
        %1818 = vmatmul.bf16.gmra.mxu0 %v292
        %v1819 = vpop.f32.mrf.mxu0
        %v1820 = vadd.f32 %v1801, %v1819
        %v1821 = vpop.f32.mrf.mxu0
        %v1822 = vadd.f32 %v1803, %v1821
        %1823 = vmatmul.bf16.gmra.mxu0 %v296
        %v1824 = vpop.f32.mrf.mxu0
        %v1825 = vadd.f32 %v1806, %v1824
        %v1826 = vpop.f32.mrf.mxu0
        %v1827 = vadd.f32 %v1808, %v1826
        %1828 = vdwg.mxu0
        %1829 = vmatpush.bf16.msra.mxu0 %v1112
        %1830 = vmatpush.bf16.msra.mxu0 %v1106
        %1831 = vmatpush.bf16.msra.mxu0 %v1100
        %1832 = vmatpush.bf16.msra.mxu0 %v1094
        %1833 = vmatpush.bf16.msra.mxu0 %v1088
        %1834 = vmatpush.bf16.msra.mxu0 %v1082
        %1835 = vmatpush.bf16.msra.mxu0 %v1076
        %1836 = vmatpush.bf16.msra.mxu0 %v1070
        %1837 = vmatmul.bf16.gmra.mxu0 %v289
        %v1838 = vpop.f32.mrf.mxu0
        %v1839 = vadd.f32 0.0, %v1838
        %v1840 = vpop.f32.mrf.mxu0
        %v1841 = vadd.f32 0.0, %v1840
        %1842 = vmatmul.bf16.gmra.mxu0 %v293
        %v1843 = vpop.f32.mrf.mxu0
        %v1844 = vadd.f32 0.0, %v1843
        %v1845 = vpop.f32.mrf.mxu0
        %v1846 = vadd.f32 0.0, %v1845
        %1847 = vdwg.mxu0
        %1848 = vmatpush.bf16.msra.mxu0 %v1160
        %1849 = vmatpush.bf16.msra.mxu0 %v1154
        %1850 = vmatpush.bf16.msra.mxu0 %v1148
        %1851 = vmatpush.bf16.msra.mxu0 %v1142
        %1852 = vmatpush.bf16.msra.mxu0 %v1136
        %1853 = vmatpush.bf16.msra.mxu0 %v1130
        %1854 = vmatpush.bf16.msra.mxu0 %v1124
        %1855 = vmatpush.bf16.msra.mxu0 %v1118
        %1856 = vmatmul.bf16.gmra.mxu0 %v290
        %v1857 = vpop.f32.mrf.mxu0
        %v1858 = vadd.f32 %v1839, %v1857
        %v1859 = vpop.f32.mrf.mxu0
        %v1860 = vadd.f32 %v1841, %v1859
        %1861 = vmatmul.bf16.gmra.mxu0 %v294
        %v1862 = vpop.f32.mrf.mxu0
        %v1863 = vadd.f32 %v1844, %v1862
        %v1864 = vpop.f32.mrf.mxu0
        %v1865 = vadd.f32 %v1846, %v1864
        %1866 = vdwg.mxu0
        %1867 = vmatpush.bf16.msra.mxu0 %v1208
        %1868 = vmatpush.bf16.msra.mxu0 %v1202
        %1869 = vmatpush.bf16.msra.mxu0 %v1196
        %1870 = vmatpush.bf16.msra.mxu0 %v1190
        %1871 = vmatpush.bf16.msra.mxu0 %v1184
        %1872 = vmatpush.bf16.msra.mxu0 %v1178
        %1873 = vmatpush.bf16.msra.mxu0 %v1172
        %1874 = vmatpush.bf16.msra.mxu0 %v1166
        %1875 = vmatmul.bf16.gmra.mxu0 %v291
        %v1876 = vpop.f32.mrf.mxu0
        %v1877 = vadd.f32 %v1858, %v1876
        %v1878 = vpop.f32.mrf.mxu0
        %v1879 = vadd.f32 %v1860, %v1878
        %1880 = vmatmul.bf16.gmra.mxu0 %v295
        %v1881 = vpop.f32.mrf.mxu0
        %v1882 = vadd.f32 %v1863, %v1881
        %v1883 = vpop.f32.mrf.mxu0
        %v1884 = vadd.f32 %v1865, %v1883
        %1885 = vdwg.mxu0
        %1886 = vmatpush.bf16.msra.mxu0 %v1256
        %1887 = vmatpush.bf16.msra.mxu0 %v1250
        %1888 = vmatpush.bf16.msra.mxu0 %v1244
        %1889 = vmatpush.bf16.msra.mxu0 %v1238
        %1890 = vmatpush.bf16.msra.mxu0 %v1232
        %1891 = vmatpush.bf16.msra.mxu0 %v1226
        %1892 = vmatpush.bf16.msra.mxu0 %v1220
        %1893 = vmatpush.bf16.msra.mxu0 %v1214
        %1894 = vmatmul.bf16.gmra.mxu0 %v292
        %v1895 = vpop.f32.mrf.mxu0
        %v1896 = vadd.f32 %v1877, %v1895
        %v1897 = vpop.f32.mrf.mxu0
        %v1898 = vadd.f32 %v1879, %v1897
        %1899 = vmatmul.bf16.gmra.mxu0 %v296
        %v1900 = vpop.f32.mrf.mxu0
        %v1901 = vadd.f32 %v1882, %v1900
        %v1902 = vpop.f32.mrf.mxu0
        %v1903 = vadd.f32 %v1884, %v1902
        %1904 = vdwg.mxu0
        %v1905 = vmul.f32 %v1516, %v1516
        %v1906 = vmul.f32 %v1592, %v1592
        %v1907 = vmul.f32 %v1668, %v1668
        %v1908 = vmul.f32 %v1518, %v1518
        %v1909 = vmul.f32 %v1594, %v1594
        %v1910 = vmul.f32 %v1670, %v1670
        %v1911 = vmul.f32 %v1744, %v1744
        %v1912 = vmul.f32 %v1820, %v1820
        %v1913 = vmul.f32 %v1896, %v1896
        %v1914 = vmul.f32 %v1746, %v1746
        %v1915 = vmul.f32 %v1822, %v1822
        %v1916 = vmul.f32 %v1898, %v1898
        %v1917 = vadd.f32 %v1905, %v1911
        %v1918 = vadd.f32 %v1906, %v1912
        %v1919 = vadd.f32 %v1907, %v1913
        %v1920 = vadd.f32 %v1908, %v1914
        %v1921 = vadd.f32 %v1909, %v1915
        %v1922 = vadd.f32 %v1910, %v1916
        %v1923 = vmax.f32 %v1917, 1e-07
        %v1924 = vmax.f32 %v1918, 1e-07
        %v1925 = vmax.f32 %v1919, 1e-07
        %v1926 = vmax.f32 %v1920, 1e-07
        %v1927 = vmax.f32 %v1921, 1e-07
        %v1928 = vmax.f32 %v1922, 1e-07
        %v1929 = vrsqrt.pop %v1923
        %v1930 = vmul.f32 %v1929, %v1923
        %v1931 = vmul.f32 %v1930, %v1929
        %v1932 = vmul.f32 0.5, %v1931
        %v1933 = vsub.f32 1.5, %v1932
        %v1934 = vmul.f32 %v1929, %v1933
        %v1935 = vmul.f32 %v1923, %v1934
        %vm1936 = vcmp.eq.f32.partialorder %v1923, inf
        %v1937 = vsel %vm1936, %v1923, %v1935
        %vm1938 = vcmp.eq.f32.partialorder %v1923, 0.0
        %v1939 = vand.u32 %v1923, 2147483648
        %v1940 = vsel %vm1938, %v1939, %v1937
        %v1941 = vrsqrt.pop %v1924
        %v1942 = vmul.f32 %v1941, %v1924
        %v1943 = vmul.f32 %v1942, %v1941
        %v1944 = vmul.f32 0.5, %v1943
        %v1945 = vsub.f32 1.5, %v1944
        %v1946 = vmul.f32 %v1941, %v1945
        %v1947 = vmul.f32 %v1924, %v1946
        %vm1948 = vcmp.eq.f32.partialorder %v1924, inf
        %v1949 = vsel %vm1948, %v1924, %v1947
        %vm1950 = vcmp.eq.f32.partialorder %v1924, 0.0
        %v1951 = vand.u32 %v1924, 2147483648
        %v1952 = vsel %vm1950, %v1951, %v1949
        %v1953 = vrsqrt.pop %v1925
        %v1954 = vmul.f32 %v1953, %v1925
        %v1955 = vmul.f32 %v1954, %v1953
        %v1956 = vmul.f32 0.5, %v1955
        %v1957 = vsub.f32 1.5, %v1956
        %v1958 = vmul.f32 %v1953, %v1957
        %v1959 = vmul.f32 %v1925, %v1958
        %vm1960 = vcmp.eq.f32.partialorder %v1925, inf
        %v1961 = vsel %vm1960, %v1925, %v1959
        %vm1962 = vcmp.eq.f32.partialorder %v1925, 0.0
        %v1963 = vand.u32 %v1925, 2147483648
        %v1964 = vsel %vm1962, %v1963, %v1961
        %v1965 = vrsqrt.pop %v1926
        %v1966 = vmul.f32 %v1965, %v1926
        %v1967 = vmul.f32 %v1966, %v1965
        %v1968 = vmul.f32 0.5, %v1967
        %v1969 = vsub.f32 1.5, %v1968
        %v1970 = vmul.f32 %v1965, %v1969
        %v1971 = vmul.f32 %v1926, %v1970
        %vm1972 = vcmp.eq.f32.partialorder %v1926, inf
        %v1973 = vsel %vm1972, %v1926, %v1971
        %vm1974 = vcmp.eq.f32.partialorder %v1926, 0.0
        %v1975 = vand.u32 %v1926, 2147483648
        %v1976 = vsel %vm1974, %v1975, %v1973
        %v1977 = vrsqrt.pop %v1927
        %v1978 = vmul.f32 %v1977, %v1927
        %v1979 = vmul.f32 %v1978, %v1977
        %v1980 = vmul.f32 0.5, %v1979
        %v1981 = vsub.f32 1.5, %v1980
        %v1982 = vmul.f32 %v1977, %v1981
        %v1983 = vmul.f32 %v1927, %v1982
        %vm1984 = vcmp.eq.f32.partialorder %v1927, inf
        %v1985 = vsel %vm1984, %v1927, %v1983
        %vm1986 = vcmp.eq.f32.partialorder %v1927, 0.0
        %v1987 = vand.u32 %v1927, 2147483648
        %v1988 = vsel %vm1986, %v1987, %v1985
        %v1989 = vrsqrt.pop %v1928
        %v1990 = vmul.f32 %v1989, %v1928
        %v1991 = vmul.f32 %v1990, %v1989
        %v1992 = vmul.f32 0.5, %v1991
        %v1993 = vsub.f32 1.5, %v1992
        %v1994 = vmul.f32 %v1989, %v1993
        %v1995 = vmul.f32 %v1928, %v1994
        %vm1996 = vcmp.eq.f32.partialorder %v1928, inf
        %v1997 = vsel %vm1996, %v1928, %v1995
        %vm1998 = vcmp.eq.f32.partialorder %v1928, 0.0
        %v1999 = vand.u32 %v1928, 2147483648
        %v2000 = vsel %vm1998, %v1999, %v1997
        %v2001 = vmul.f32 %v1521, %v1521
        %v2002 = vmul.f32 %v1597, %v1597
        %v2003 = vmul.f32 %v1673, %v1673
        %v2004 = vmul.f32 %v1523, %v1523
        %v2005 = vmul.f32 %v1599, %v1599
        %v2006 = vmul.f32 %v1675, %v1675
        %v2007 = vmul.f32 %v1749, %v1749
        %v2008 = vmul.f32 %v1825, %v1825
        %v2009 = vmul.f32 %v1901, %v1901
        %v2010 = vmul.f32 %v1751, %v1751
        %v2011 = vmul.f32 %v1827, %v1827
        %v2012 = vmul.f32 %v1903, %v1903
        %v2013 = vadd.f32 %v2001, %v2007
        %v2014 = vadd.f32 %v2002, %v2008
        %v2015 = vadd.f32 %v2003, %v2009
        %v2016 = vadd.f32 %v2004, %v2010
        %v2017 = vadd.f32 %v2005, %v2011
        %v2018 = vadd.f32 %v2006, %v2012
        %v2019 = vmax.f32 %v2013, 1e-07
        %v2020 = vmax.f32 %v2014, 1e-07
        %v2021 = vmax.f32 %v2015, 1e-07
        %v2022 = vmax.f32 %v2016, 1e-07
        %v2023 = vmax.f32 %v2017, 1e-07
        %v2024 = vmax.f32 %v2018, 1e-07
        %v2025 = vrsqrt.pop %v2019
        %v2026 = vmul.f32 %v2025, %v2019
        %v2027 = vmul.f32 %v2026, %v2025
        %v2028 = vmul.f32 0.5, %v2027
        %v2029 = vsub.f32 1.5, %v2028
        %v2030 = vmul.f32 %v2025, %v2029
        %v2031 = vmul.f32 %v2019, %v2030
        %vm2032 = vcmp.eq.f32.partialorder %v2019, inf
        %v2033 = vsel %vm2032, %v2019, %v2031
        %vm2034 = vcmp.eq.f32.partialorder %v2019, 0.0
        %v2035 = vand.u32 %v2019, 2147483648
        %v2036 = vsel %vm2034, %v2035, %v2033
        %v2037 = vrsqrt.pop %v2020
        %v2038 = vmul.f32 %v2037, %v2020
        %v2039 = vmul.f32 %v2038, %v2037
        %v2040 = vmul.f32 0.5, %v2039
        %v2041 = vsub.f32 1.5, %v2040
        %v2042 = vmul.f32 %v2037, %v2041
        %v2043 = vmul.f32 %v2020, %v2042
        %vm2044 = vcmp.eq.f32.partialorder %v2020, inf
        %v2045 = vsel %vm2044, %v2020, %v2043
        %vm2046 = vcmp.eq.f32.partialorder %v2020, 0.0
        %v2047 = vand.u32 %v2020, 2147483648
        %v2048 = vsel %vm2046, %v2047, %v2045
        %v2049 = vrsqrt.pop %v2021
        %v2050 = vmul.f32 %v2049, %v2021
        %v2051 = vmul.f32 %v2050, %v2049
        %v2052 = vmul.f32 0.5, %v2051
        %v2053 = vsub.f32 1.5, %v2052
        %v2054 = vmul.f32 %v2049, %v2053
        %v2055 = vmul.f32 %v2021, %v2054
        %vm2056 = vcmp.eq.f32.partialorder %v2021, inf
        %v2057 = vsel %vm2056, %v2021, %v2055
        %vm2058 = vcmp.eq.f32.partialorder %v2021, 0.0
        %v2059 = vand.u32 %v2021, 2147483648
        %v2060 = vsel %vm2058, %v2059, %v2057
        %v2061 = vrsqrt.pop %v2022
        %v2062 = vmul.f32 %v2061, %v2022
        %v2063 = vmul.f32 %v2062, %v2061
        %v2064 = vmul.f32 0.5, %v2063
        %v2065 = vsub.f32 1.5, %v2064
        %v2066 = vmul.f32 %v2061, %v2065
        %v2067 = vmul.f32 %v2022, %v2066
        %vm2068 = vcmp.eq.f32.partialorder %v2022, inf
        %v2069 = vsel %vm2068, %v2022, %v2067
        %vm2070 = vcmp.eq.f32.partialorder %v2022, 0.0
        %v2071 = vand.u32 %v2022, 2147483648
        %v2072 = vsel %vm2070, %v2071, %v2069
        %v2073 = vrsqrt.pop %v2023
        %v2074 = vmul.f32 %v2073, %v2023
        %v2075 = vmul.f32 %v2074, %v2073
        %v2076 = vmul.f32 0.5, %v2075
        %v2077 = vsub.f32 1.5, %v2076
        %v2078 = vmul.f32 %v2073, %v2077
        %v2079 = vmul.f32 %v2023, %v2078
        %vm2080 = vcmp.eq.f32.partialorder %v2023, inf
        %v2081 = vsel %vm2080, %v2023, %v2079
        %vm2082 = vcmp.eq.f32.partialorder %v2023, 0.0
        %v2083 = vand.u32 %v2023, 2147483648
        %v2084 = vsel %vm2082, %v2083, %v2081
        %v2085 = vrsqrt.pop %v2024
        %v2086 = vmul.f32 %v2085, %v2024
        %v2087 = vmul.f32 %v2086, %v2085
        %v2088 = vmul.f32 0.5, %v2087
        %v2089 = vsub.f32 1.5, %v2088
        %v2090 = vmul.f32 %v2085, %v2089
        %v2091 = vmul.f32 %v2024, %v2090
        %vm2092 = vcmp.eq.f32.partialorder %v2024, inf
        %v2093 = vsel %vm2092, %v2024, %v2091
        %vm2094 = vcmp.eq.f32.partialorder %v2024, 0.0
        %v2095 = vand.u32 %v2024, 2147483648
        %v2096 = vsel %vm2094, %v2095, %v2093
        %v2097 = vsub.f32 %v1940, %v2036
        %v2098 = vsub.f32 %v1952, %v2048
        %v2099 = vsub.f32 %v1964, %v2060
        %v2100 = vsub.f32 %v1976, %v2072
        %v2101 = vsub.f32 %v1988, %v2084
        %v2102 = vsub.f32 %v2000, %v2096
        %v2103 = vand.u32 2147483647, %v2097
        %v2104 = vand.u32 2147483647, %v2098
        %v2105 = vand.u32 2147483647, %v2099
        %v2106 = vand.u32 2147483647, %v2100
        %v2107 = vand.u32 2147483647, %v2101
        %v2108 = vand.u32 2147483647, %v2102
        %v2109 = vadd.f32 %v2103, %v2106
        %v2110 = vadd.f32 %v2104, %v2107
        %v2111 = vadd.f32 %v2105, %v2108
        %p2112 = scmp.eq.s32.totalorder %s28, 0
        // Predicated region
        $region45: #{tpu_custom_call.1} parent=31 // pred_check
          %p2113 = pneg %p2112
        $region46: #{tpu_custom_call.1} parent=31 // pred_check_branch
          %2115 = sbr.rel (%p2113) target = $region48
        $region47: #{tpu_custom_call.1} parent=31 // pred_region
          %2116 = vst [vmem:[%s260] sm:$0xff] 0.0
          %2117 = vst [vmem:[%s260 + $0x8] sm:$0xff] 0.0
          %2118 = vst [vmem:[%s260 + $0x10] sm:$0xff] 0.0
        $region48: #{tpu_custom_call.1} parent=31 // pred_fallthru
          _
        %v2119 = vld [vmem:[%s260] sm:$0xff]
        %v2120 = vld [vmem:[%s260 + $0x8] sm:$0xff]
        %v2121 = vld [vmem:[%s260 + $0x10] sm:$0xff]
        %v2122 = vadd.f32 %v2119, %v2109
        %v2123 = vadd.f32 %v2120, %v2110
        %v2124 = vadd.f32 %v2121, %v2111
        %2125 = vst [vmem:[%s260] sm:$0xff] %v2122
        %2126 = vst [vmem:[%s260 + $0x8] sm:$0xff] %v2123
        %2127 = vst [vmem:[%s260 + $0x10] sm:$0xff] %v2124
        %s2128 = sand.u32 %s116, 1
        %s2129 = scalar_lea.sflag [#allocation4], %s2128
        %s2130 = sand.u32 %s116, 1
        %s2131 = smul.addr %s2130, 24
        %s2132 = scalar_lea.vmem [#allocation8], %s2131
        // Predicated region
        $region49: #{tpu_custom_call.1} parent=31 // pred_check
          %p2133 = pneg %p126
        $region50: #{tpu_custom_call.1} parent=31 // pred_check_branch
          %2135 = sbr.rel (%p2133) target = $region52
        $region51: #{tpu_custom_call.1} parent=31 // pred_region
          %2137 = vsyncadd %s2129, 0
          %s2138 = smul.addr %s27, 3
          %s2139 = smul.addr %s2138, 8
          %s2140 = scalar_lea.hbm %s3, %s2139
          %s2142 = sshll.u32 %s2132, 4
          %s2143 = int_to_ptr.vmem [resolvable:$true] %s2142
          %s2144 = sshll.u32 %s2140, 4
          %s2145 = int_to_ptr.hbm [resolvable:$true] %s2144
          %2147 = dma.vmem_to_hbm [thread:$0]  %s2143, 384, %s2145, %s2129
        $region52: #{tpu_custom_call.1} parent=31 // pred_fallthru
          _
      $region32: #{tpu_custom_call.1} parent=5 // pred_fallthru
        _
      %p2148 = scmp.le.s32.totalorder 2, %s18
      // Predicated region
      $region53: #{tpu_custom_call.1} parent=5 // pred_check
        %p2149 = pneg %p2148
      $region54: #{tpu_custom_call.1} parent=5 // pred_check_branch
        %2151 = sbr.rel (%p2149) target = $region56
      $region55: #{tpu_custom_call.1} parent=5 // pred_region
        %s2152 = ssub.s32 %s18, 2
        // Predicated region
        $region57: #{tpu_custom_call.1} parent=55 // pred_check
          %p2153 = pneg %p132
        $region58: #{tpu_custom_call.1} parent=55 // pred_check_branch
          %2155 = sbr.rel (%p2153) target = $region60
        $region59: #{tpu_custom_call.1} parent=55 // pred_region
          %s2156 = sand.u32 %s117, 1
          %s2157 = scalar_lea.sflag [#allocation4], %s2156
          %s2158 = sand.u32 %s117, 1
          %s2159 = smul.addr %s2158, 24
          %s2160 = scalar_lea.vmem [#allocation8], %s2159
          %2162 = dma.done %s2157, 384
        $region60: #{tpu_custom_call.1} parent=55 // pred_fallthru
          _
      $region56: #{tpu_custom_call.1} parent=5 // pred_fallthru
        _
    $region6: #{tpu_custom_call.1} parent=1 // loop_footer
      %s22 = sadd.s32 1, %s18
    $region7: #{tpu_custom_call.1} parent=1 // loop_footer_branch
      %17 = sbr.rel target = $region3
    $region8: #{tpu_custom_call.1} parent=1 // loop_exit
      _
    %2163 = vsyncpa [#allocation3], 1
    %s2164 = scalar_lea.sflag [#allocation3], 1
    %2165 = vsyncpa %s2164, 1
    %2166 = vsyncpa [#allocation6], 1
    %s2167 = scalar_lea.sflag [#allocation6], 1
    %2168 = vsyncpa %s2167, 1
    %2169 = vsyncpa [#allocation4], 1
    %s2170 = scalar_lea.sflag [#allocation4], 1
    %2171 = vsyncpa %s2170, 1

</llo_original>
